<compile_context>
chip_gen: v7x
topology: tpu7x:2x2x1
jax: 0.10.0
libtpu: 0.0.40
codegen_flags: <defaults>
</compile_context>

<pallas_src>
import math
from functools import partial

import jax
import jax.numpy as jnp
from jax.experimental import pallas as pl
from jax.experimental.pallas import tpu as pltpu

EPS = 1e-5                     # matches LayerNorm.eps in the PyTorch module
TM = 256                       # token-row tile for the FFN / logits kernels
TN_LOGITS = 1024               # vocab tile for the (final-LN + logits) kernel
VMEM_LIMIT = 32 * 1024 * 1024  # conservative hint; fits v7x's 64 MiB VMEM


# ---------------------------------------------------------------- helpers ---

def _layernorm_f32(x, scale, shift):
    # unbiased=False variance, f32 statistics (torch var(unbiased=False))
    mean = jnp.mean(x, axis=-1, keepdims=True)
    var = jnp.mean((x - mean) ** 2, axis=-1, keepdims=True)
    return scale * ((x - mean) * jax.lax.rsqrt(var + EPS)) + shift


# ---------------------------------------------------------------- kernels ---

def _attn_block_kernel(x_ref, sc_ref, sh_ref, wqkv_ref, wo_ref, bo_ref,
                       o_ref, ctx_ref, *, n_heads, head_dim):
    # LN1 + fused QKV + causal multi-head attention + Wo + residual.
    # One batch per grid step; bf16 residual stream in/out, f32 math inside.
    x = x_ref[0]                                           # (T, D) bf16
    T = x.shape[0]
    D = n_heads * head_dim

    h = _layernorm_f32(x.astype(jnp.float32), sc_ref[...], sh_ref[...])
    # 1/sqrt(head_dim) is folded into the Wq columns of Wqkv (see init_params).
    qkv = jnp.dot(h.astype(jnp.bfloat16), wqkv_ref[...],
                  preferred_element_type=jnp.float32).astype(jnp.bfloat16)

    row = jax.lax.broadcasted_iota(jnp.int32, (T, T), 0)
    col = jax.lax.broadcasted_iota(jnp.int32, (T, T), 1)
    causal = col <= row
    neg = jnp.float32(-1e30)   # finite mask value: masked rows can't NaN

    # Per-head scores/softmax; each head's context written straight into the
    # (T, D) bf16 VMEM scratch slab (no concat, bounded live ranges).
    for hh in range(n_heads):
        lo = hh * head_dim
        q = qkv[:, lo:lo + head_dim]
        k = qkv[:, D + lo:D + lo + head_dim]
        v = qkv[:, 2 * D + lo:2 * D + lo + head_dim]
        s = jax.lax.dot_general(q, k, (((1,), (1,)), ((), ())),
                                preferred_element_type=jnp.float32)   # (T, T)
        s = jnp.where(causal, s, neg)
        m = jnp.max(s, axis=-1, keepdims=True)
        p = jnp.exp(s - m)
        # row-normalize via EUP reciprocal + multiply (no (T,T) VALU divide)
        p = p * pl.reciprocal(jnp.sum(p, axis=-1, keepdims=True), approx=True)
        ctx_ref[:, lo:lo + head_dim] = jnp.dot(
            p.astype(jnp.bfloat16), v,
            preferred_element_type=jnp.float32).astype(jnp.bfloat16)

    out = jnp.dot(ctx_ref[...], wo_ref[...],
                  preferred_element_type=jnp.float32) + bo_ref[...]
    # fused residual (drop_shortcut / attention dropout = identity)
    o_ref[0] = (out + x.astype(jnp.float32)).astype(jnp.bfloat16)


def _ln_ffn_kernel(x_ref, sc_ref, sh_ref, w1_ref, b1_ref, w2_ref, b2_ref, o_ref):
    # LN2 + Linear + GELU(tanh) + Linear + residual; bf16 stream in/out.
    x = x_ref[...].astype(jnp.float32)
    h = _layernorm_f32(x, sc_ref[...], sh_ref[...])
    h1 = jnp.dot(h.astype(jnp.bfloat16), w1_ref[...],
                 preferred_element_type=jnp.float32) + b1_ref[...]
    c = jnp.float32(math.sqrt(2.0 / math.pi))
    g = 0.5 * h1 * (1.0 + jnp.tanh(c * (h1 + 0.044715 * h1 ** 3)))   # GELU, f32
    y = jnp.dot(g.astype(jnp.bfloat16), w2_ref[...],
                preferred_element_type=jnp.float32) + b2_ref[...]
    o_ref[...] = (y + x).astype(jnp.bfloat16)                        # residual


def _ln_logits_kernel(x_ref, sc_ref, sh_ref, w_ref, o_ref):
    # final_norm + out_head (bias-free), tiled over (token rows, vocab).
    # LN is cheap VPU work recomputed per vocab tile; hides under the matmul.
    h = _layernorm_f32(x_ref[...].astype(jnp.float32), sc_ref[...], sh_ref[...])
    o_ref[...] = jnp.dot(h.astype(jnp.bfloat16), w_ref[...],
                         preferred_element_type=jnp.float32).astype(o_ref.dtype)


# --------------------------------------------------------------- wrappers ---

def attn_block(x, ln_scale, ln_shift, wqkv, wo, bo, n_heads):
    B, T, D = x.shape
    hd = D // n_heads
    kern = partial(_attn_block_kernel, n_heads=n_heads, head_dim=hd)
    return pl.pallas_call(
        kern,
        out_shape=jax.ShapeDtypeStruct((B, T, D), jnp.bfloat16),
        grid=(B,),
        in_specs=[pl.BlockSpec((1, T, D), lambda b: (b, 0, 0)),
                  pl.BlockSpec((1, D), lambda b: (0, 0)),
                  pl.BlockSpec((1, D), lambda b: (0, 0)),
                  pl.BlockSpec((D, 3 * D), lambda b: (0, 0)),
                  pl.BlockSpec((D, D), lambda b: (0, 0)),
                  pl.BlockSpec((1, D), lambda b: (0, 0))],
        out_specs=pl.BlockSpec((1, T, D), lambda b: (b, 0, 0)),
        scratch_shapes=[pltpu.VMEM((T, D), jnp.bfloat16)],
        input_output_aliases={0: 0},      # in-place residual update
        compiler_params=pltpu.CompilerParams(
            dimension_semantics=("parallel",),
            vmem_limit_bytes=VMEM_LIMIT),
    )(x, ln_scale.reshape(1, D), ln_shift.reshape(1, D), wqkv, wo,
      bo.reshape(1, D))


def ln_ffn_residual(x2d, scale, shift, w1, b1, w2, b2):
    M, D = x2d.shape
    Dh = w1.shape[1]
    tm = min(M, TM)
    # NOTE: if M % tm != 0 the trailing block runs LN on padded rows; this is
    # correct because LN/FFN are strictly row-wise and padded rows are masked
    # on writeback.
    return pl.pallas_call(
        _ln_ffn_kernel,
        out_shape=jax.ShapeDtypeStruct((M, D), jnp.bfloat16),
        grid=(pl.cdiv(M, tm),),
        in_specs=[pl.BlockSpec((tm, D), lambda i: (i, 0)),
                  pl.BlockSpec((1, D), lambda i: (0, 0)),
                  pl.BlockSpec((1, D), lambda i: (0, 0)),
                  pl.BlockSpec((D, Dh), lambda i: (0, 0)),
                  pl.BlockSpec((1, Dh), lambda i: (0, 0)),
                  pl.BlockSpec((Dh, D), lambda i: (0, 0)),
                  pl.BlockSpec((1, D), lambda i: (0, 0))],
        out_specs=pl.BlockSpec((tm, D), lambda i: (i, 0)),
        input_output_aliases={0: 0},      # in-place residual update
        compiler_params=pltpu.CompilerParams(
            dimension_semantics=("parallel",),
            vmem_limit_bytes=VMEM_LIMIT),
    )(x2d, scale.reshape(1, D), shift.reshape(1, D),
      w1, b1.reshape(1, Dh), w2, b2.reshape(1, D))


def ln_logits(x2d, scale, shift, wout):
    M, D = x2d.shape
    V = wout.shape[1]
    tm = min(M, TM)
    tn = min(V, TN_LOGITS)
    return pl.pallas_call(
        _ln_logits_kernel,
        out_shape=jax.ShapeDtypeStruct((M, V), jnp.bfloat16),   # bf16 logits
        grid=(pl.cdiv(M, tm), pl.cdiv(V, tn)),
        in_specs=[pl.BlockSpec((tm, D), lambda i, j: (i, 0)),
                  pl.BlockSpec((1, D), lambda i, j: (0, 0)),
                  pl.BlockSpec((1, D), lambda i, j: (0, 0)),
                  pl.BlockSpec((D, tn), lambda i, j: (0, j))],
        out_specs=pl.BlockSpec((tm, tn), lambda i, j: (i, j)),
        compiler_params=pltpu.CompilerParams(
            dimension_semantics=("parallel", "parallel"),
            vmem_limit_bytes=VMEM_LIMIT),
    )(x2d, scale.reshape(1, D), shift.reshape(1, D), wout)


# ----------------------------------------------------------------- model ----

def init_params(key, cfg):
    D, V, C = cfg['emb_dim'], cfg['vocab_size'], cfg['context_length']
    H, L = cfg['n_heads'], cfg['n_layers']
    hd = D // H
    keys = jax.random.split(key, 3 + L)

    def nrm(k, shape):
        return (0.02 * jax.random.normal(k, shape)).astype(jnp.float32)

    params = {
        'tok_emb': nrm(keys[0], (V, D)),
        'pos_emb': nrm(keys[1], (C, D)),
        'fn_scale': jnp.ones((D,), jnp.float32),
        'fn_shift': jnp.zeros((D,), jnp.float32),
        'Wout': nrm(keys[2], (D, V)).astype(jnp.bfloat16),   # out_head, bias=False
        'blocks': [],
    }
    qk_scale = 1.0 / math.sqrt(hd)
    for l in range(L):
        bk = jax.random.split(keys[3 + l], 6)
        Wq, Wk, Wv = nrm(bk[0], (D, D)), nrm(bk[1], (D, D)), nrm(bk[2], (D, D))
        # Fuse QKV into one (D, 3D) weight; fold the 1/sqrt(head_dim) attention
        # scale into Wq (mathematically equivalent, zero kernel cost).
        wqkv = jnp.concatenate([Wq * qk_scale, Wk, Wv], axis=1).astype(jnp.bfloat16)
        params['blocks'].append({
            'ln1_scale': jnp.ones((D,), jnp.float32),
            'ln1_shift': jnp.zeros((D,), jnp.float32),
            'ln2_scale': jnp.ones((D,), jnp.float32),
            'ln2_shift': jnp.zeros((D,), jnp.float32),
            'Wqkv': wqkv,                                     # qkv_bias=False
            'Wo': nrm(bk[3], (D, D)).astype(jnp.bfloat16),
            'bo': jnp.zeros((D,), jnp.float32),
            'W1': nrm(bk[4], (D, 4 * D)).astype(jnp.bfloat16),
            'b1': jnp.zeros((4 * D,), jnp.float32),
            'W2': nrm(bk[5], (4 * D, D)).astype(jnp.bfloat16),
            'b2': jnp.zeros((D,), jnp.float32),
        })
    return params


def gpt_forward(params, in_idx, cfg):
    B, T = in_idx.shape
    D, H = cfg['emb_dim'], cfg['n_heads']
    V = params['Wout'].shape[1]

    # embedding lookup + positional add (plain-JAX glue); drop_emb = identity.
    x = (params['tok_emb'][in_idx] + params['pos_emb'][:T][None, :, :]
         ).astype(jnp.bfloat16)                              # bf16 residual stream

    for blk in params['blocks']:
        # --- attention sub-block: LN1 + QKV + MHA + Wo + residual (one call) ---
        x = attn_block(x, blk['ln1_scale'], blk['ln1_shift'],
                       blk['Wqkv'], blk['Wo'], blk['bo'], H)
        # --- feed-forward sub-block: LN2 + FFN + residual (one call) ---
        x = ln_ffn_residual(x.reshape(B * T, D),
                            blk['ln2_scale'], blk['ln2_shift'],
                            blk['W1'], blk['b1'], blk['W2'], blk['b2']
                            ).reshape(B, T, D)

    # --- head: final LayerNorm fused into the vocab projection ---
    logits = ln_logits(x.reshape(B * T, D),
                       params['fn_scale'], params['fn_shift'], params['Wout'])
    return logits.reshape(B, T, V)


# ------------------------------------------------------------- reference ----

def _ref_ln(x, scale, shift):
    mean = jnp.mean(x, axis=-1, keepdims=True)
    var = jnp.mean((x - mean) ** 2, axis=-1, keepdims=True)
    return scale * ((x - mean) / jnp.sqrt(var + EPS)) + shift


def reference_forward(params, in_idx, cfg):
    """Pure-JAX f32 reference (same packed weights, full-precision math)."""
    B, T = in_idx.shape
    D, H = cfg['emb_dim'], cfg['n_heads']
    hd = D // H
    x = params['tok_emb'][in_idx] + params['pos_emb'][:T][None]
    mask = jnp.tril(jnp.ones((T, T), dtype=bool))
    for blk in params['blocks']:
        h = _ref_ln(x, blk['ln1_scale'], blk['ln1_shift'])
        qkv = h @ blk['Wqkv'].astype(jnp.float32)
        q, k, v = jnp.split(qkv, 3, axis=-1)
        q = q.reshape(B, T, H, hd).transpose(0, 2, 1, 3)
        k = k.reshape(B, T, H, hd).transpose(0, 2, 1, 3)
        v = v.reshape(B, T, H, hd).transpose(0, 2, 1, 3)
        s = jnp.einsum('bhqd,bhkd->bhqk', q, k)
        s = jnp.where(mask, s, -jnp.inf)
        w = jax.nn.softmax(s, axis=-1)
        ctx = jnp.einsum('bhqk,bhkd->bhqd', w, v
                         ).transpose(0, 2, 1, 3).reshape(B, T, D)
        x = x + ctx @ blk['Wo'].astype(jnp.float32) + blk['bo']
        h = _ref_ln(x, blk['ln2_scale'], blk['ln2_shift'])
        h1 = h @ blk['W1'].astype(jnp.float32) + blk['b1']
        g = 0.5 * h1 * (1.0 + jnp.tanh(math.sqrt(2.0 / math.pi)
                                       * (h1 + 0.044715 * h1 ** 3)))
        x = x + g @ blk['W2'].astype(jnp.float32) + blk['b2']
    xf = _ref_ln(x, params['fn_scale'], params['fn_shift'])
    return xf @ params['Wout'].astype(jnp.float32)


# ------------------------------------------------------------------ main ----

if __name__ == "__main__":
    # Shrunk GPT config (same structure as GPT_CONFIG_124M, small shapes)
    cfg = {'vocab_size': 128, 'context_length': 16, 'emb_dim': 64,
           'n_heads': 4, 'n_layers': 2, 'drop_rate': 0.1, 'qkv_bias': False}

    key = jax.random.PRNGKey(0)
    k_params, k_idx = jax.random.split(key)
    params = init_params(k_params, cfg)

    B, T = 2, 8
    in_idx = jax.random.randint(k_idx, (B, T), 0, cfg['vocab_size'],
                                dtype=jnp.int32)

    fwd = jax.jit(lambda p, idx: gpt_forward(p, idx, cfg))
    logits = fwd(params, in_idx)
    jax.block_until_ready(logits)

    assert logits.shape == (B, T, cfg['vocab_size'])
    assert logits.dtype == jnp.bfloat16

    # Tolerance-asserted pure-JAX reference (bf16 mixed precision vs f32 math).
    ref = reference_forward(params, in_idx, cfg)
    err = float(jnp.max(jnp.abs(logits.astype(jnp.float32) - ref)))
    assert err < 0.08, f"max |err| vs reference = {err}"

    print("KERNEL_OK")
</pallas_src>

<mosaic_0001>
module attributes {stable_mosaic.version = 11 : i64} {
  func.func @_ln_ffn_kernel(%arg0: i32, %arg1: memref<16x64xbf16, #tpu.memory_space<vmem>>, %arg2: memref<1x64xf32, #tpu.memory_space<vmem>>, %arg3: memref<1x64xf32, #tpu.memory_space<vmem>>, %arg4: memref<64x256xbf16, #tpu.memory_space<vmem>>, %arg5: memref<1x256xf32, #tpu.memory_space<vmem>>, %arg6: memref<256x64xbf16, #tpu.memory_space<vmem>>, %arg7: memref<1x64xf32, #tpu.memory_space<vmem>>, %arg8: memref<16x64xbf16, #tpu.memory_space<vmem>>) attributes {dimension_semantics = [#tpu.dimension_semantics<parallel>], iteration_bounds = array<i64: 1>, scalar_prefetch = 0 : i64, scratch_operands = 0 : i64, tpu.core_type = #tpu.core_type<tc>, window_params = [{transform_indices = @transform_0, window_bounds = array<i64: 16, 64>}, {pipeline_mode = #tpu.pipeline_mode<synchronous>, transform_indices = @transform_1, window_bounds = array<i64: 1, 64>}, {pipeline_mode = #tpu.pipeline_mode<synchronous>, transform_indices = @transform_2, window_bounds = array<i64: 1, 64>}, {pipeline_mode = #tpu.pipeline_mode<synchronous>, transform_indices = @transform_3, window_bounds = array<i64: 64, 256>}, {pipeline_mode = #tpu.pipeline_mode<synchronous>, transform_indices = @transform_4, window_bounds = array<i64: 1, 256>}, {pipeline_mode = #tpu.pipeline_mode<synchronous>, transform_indices = @transform_5, window_bounds = array<i64: 256, 64>}, {pipeline_mode = #tpu.pipeline_mode<synchronous>, transform_indices = @transform_6, window_bounds = array<i64: 1, 64>}, {transform_indices = @transform_7, window_bounds = array<i64: 16, 64>}]} {
    %c0 = arith.constant 0 : index
    %c0_0 = arith.constant 0 : index
    %0 = vector.load %arg1[%c0, %c0_0] : memref<16x64xbf16, #tpu.memory_space<vmem>>, vector<16x64xbf16>
    %1 = arith.extf %0 : vector<16x64xbf16> to vector<16x64xf32>
    %c0_1 = arith.constant 0 : index
    %c0_2 = arith.constant 0 : index
    %2 = vector.load %arg2[%c0_1, %c0_2] : memref<1x64xf32, #tpu.memory_space<vmem>>, vector<1x64xf32>
    %c0_3 = arith.constant 0 : index
    %c0_4 = arith.constant 0 : index
    %3 = vector.load %arg3[%c0_3, %c0_4] : memref<1x64xf32, #tpu.memory_space<vmem>>, vector<1x64xf32>
    %cst = arith.constant dense<0.000000e+00> : vector<16xf32>
    %4 = vector.multi_reduction <add>, %1, %cst [1] : vector<16x64xf32> to vector<16xf32>
    %5 = vector.shape_cast %4 : vector<16xf32> to vector<16x1xf32>
    %cst_5 = arith.constant 6.400000e+01 : f32
    %6 = vector.broadcast %cst_5 : f32 to vector<16x1xf32>
    %7 = arith.divf %5, %6 : vector<16x1xf32>
    %8 = vector.broadcast %7 : vector<16x1xf32> to vector<16x64xf32>
    %9 = arith.subf %1, %8 : vector<16x64xf32>
    %10 = arith.mulf %9, %9 : vector<16x64xf32>
    %cst_6 = arith.constant dense<0.000000e+00> : vector<16xf32>
    %11 = vector.multi_reduction <add>, %10, %cst_6 [1] : vector<16x64xf32> to vector<16xf32>
    %12 = vector.shape_cast %11 : vector<16xf32> to vector<16x1xf32>
    %cst_7 = arith.constant 6.400000e+01 : f32
    %13 = vector.broadcast %cst_7 : f32 to vector<16x1xf32>
    %14 = arith.divf %12, %13 : vector<16x1xf32>
    %15 = vector.broadcast %7 : vector<16x1xf32> to vector<16x64xf32>
    %16 = arith.subf %1, %15 : vector<16x64xf32>
    %cst_8 = arith.constant 9.99999974E-6 : f32
    %17 = vector.broadcast %cst_8 : f32 to vector<16x1xf32>
    %18 = arith.addf %14, %17 : vector<16x1xf32>
    %19 = math.rsqrt %18 : vector<16x1xf32>
    %20 = vector.broadcast %19 : vector<16x1xf32> to vector<16x64xf32>
    %21 = arith.mulf %16, %20 : vector<16x64xf32>
    %22 = vector.broadcast %2 : vector<1x64xf32> to vector<16x64xf32>
    %23 = arith.mulf %22, %21 : vector<16x64xf32>
    %24 = vector.broadcast %3 : vector<1x64xf32> to vector<16x64xf32>
    %25 = arith.addf %23, %24 : vector<16x64xf32>
    %26 = arith.truncf %25 : vector<16x64xf32> to vector<16x64xbf16>
    %c0_9 = arith.constant 0 : index
    %c0_10 = arith.constant 0 : index
    %27 = vector.load %arg4[%c0_9, %c0_10] : memref<64x256xbf16, #tpu.memory_space<vmem>>, vector<64x256xbf16>
    %cst_11 = arith.constant dense<0.000000e+00> : vector<16x256xf32>
    %28 = tpu.matmul %26, %27, %cst_11 {dimension_numbers = #tpu.dot_dimension_numbers<[1], [0], [0], [1], [0, 0, 1, 1], [], []>} : vector<16x64xbf16>, vector<64x256xbf16>, vector<16x256xf32> -> vector<16x256xf32>
    %c0_12 = arith.constant 0 : index
    %c0_13 = arith.constant 0 : index
    %29 = vector.load %arg5[%c0_12, %c0_13] : memref<1x256xf32, #tpu.memory_space<vmem>>, vector<1x256xf32>
    %30 = vector.broadcast %29 : vector<1x256xf32> to vector<16x256xf32>
    %31 = arith.addf %28, %30 : vector<16x256xf32>
    %cst_14 = arith.constant 5.000000e-01 : f32
    %32 = vector.broadcast %cst_14 : f32 to vector<16x256xf32>
    %33 = arith.mulf %32, %31 : vector<16x256xf32>
    %34 = arith.mulf %31, %31 : vector<16x256xf32>
    %35 = arith.mulf %31, %34 : vector<16x256xf32>
    %cst_15 = arith.constant 4.471500e-02 : f32
    %36 = vector.broadcast %cst_15 : f32 to vector<16x256xf32>
    %37 = arith.mulf %36, %35 : vector<16x256xf32>
    %38 = arith.addf %31, %37 : vector<16x256xf32>
    %cst_16 = arith.constant 0.797884583 : f32
    %39 = vector.broadcast %cst_16 : f32 to vector<16x256xf32>
    %40 = arith.mulf %39, %38 : vector<16x256xf32>
    %41 = math.tanh %40 : vector<16x256xf32>
    %cst_17 = arith.constant 1.000000e+00 : f32
    %42 = vector.broadcast %cst_17 : f32 to vector<16x256xf32>
    %43 = arith.addf %42, %41 : vector<16x256xf32>
    %44 = arith.mulf %33, %43 : vector<16x256xf32>
    %45 = arith.truncf %44 : vector<16x256xf32> to vector<16x256xbf16>
    %c0_18 = arith.constant 0 : index
    %c0_19 = arith.constant 0 : index
    %46 = vector.load %arg6[%c0_18, %c0_19] : memref<256x64xbf16, #tpu.memory_space<vmem>>, vector<256x64xbf16>
    %cst_20 = arith.constant dense<0.000000e+00> : vector<16x64xf32>
    %47 = tpu.matmul %45, %46, %cst_20 {dimension_numbers = #tpu.dot_dimension_numbers<[1], [0], [0], [1], [0, 0, 1, 1], [], []>} : vector<16x256xbf16>, vector<256x64xbf16>, vector<16x64xf32> -> vector<16x64xf32>
    %c0_21 = arith.constant 0 : index
    %c0_22 = arith.constant 0 : index
    %48 = vector.load %arg7[%c0_21, %c0_22] : memref<1x64xf32, #tpu.memory_space<vmem>>, vector<1x64xf32>
    %49 = vector.broadcast %48 : vector<1x64xf32> to vector<16x64xf32>
    %50 = arith.addf %47, %49 : vector<16x64xf32>
    %51 = arith.addf %50, %1 : vector<16x64xf32>
    %52 = arith.truncf %51 : vector<16x64xf32> to vector<16x64xbf16>
    %c0_23 = arith.constant 0 : index
    %c0_24 = arith.constant 0 : index
    %53 = vector.load %arg8[%c0_23, %c0_24] : memref<16x64xbf16, #tpu.memory_space<vmem>>, vector<16x64xbf16>
    tpu.vector_store %arg8[%c0_23, %c0_24], %52 {strides = array<i32>} : memref<16x64xbf16, #tpu.memory_space<vmem>>, vector<16x64xbf16>,
    return
  }
  func.func @transform_0(%arg0: i32) -> (i32, i32) {
    %c0_i32 = arith.constant 0 : i32
    %c0_i32_0 = arith.constant 0 : i32
    return %arg0, %c0_i32 : i32, i32
  }
  func.func @transform_1(%arg0: i32) -> (i32, i32) {
    %c0_i32 = arith.constant 0 : i32
    %c0_i32_0 = arith.constant 0 : i32
    %c0_i32_1 = arith.constant 0 : i32
    return %c0_i32, %c0_i32_0 : i32, i32
  }
  func.func @transform_2(%arg0: i32) -> (i32, i32) {
    %c0_i32 = arith.constant 0 : i32
    %c0_i32_0 = arith.constant 0 : i32
    %c0_i32_1 = arith.constant 0 : i32
    return %c0_i32, %c0_i32_0 : i32, i32
  }
  func.func @transform_3(%arg0: i32) -> (i32, i32) {
    %c0_i32 = arith.constant 0 : i32
    %c0_i32_0 = arith.constant 0 : i32
    %c0_i32_1 = arith.constant 0 : i32
    return %c0_i32, %c0_i32_0 : i32, i32
  }
  func.func @transform_4(%arg0: i32) -> (i32, i32) {
    %c0_i32 = arith.constant 0 : i32
    %c0_i32_0 = arith.constant 0 : i32
    %c0_i32_1 = arith.constant 0 : i32
    return %c0_i32, %c0_i32_0 : i32, i32
  }
  func.func @transform_5(%arg0: i32) -> (i32, i32) {
    %c0_i32 = arith.constant 0 : i32
    %c0_i32_0 = arith.constant 0 : i32
    %c0_i32_1 = arith.constant 0 : i32
    return %c0_i32, %c0_i32_0 : i32, i32
  }
  func.func @transform_6(%arg0: i32) -> (i32, i32) {
    %c0_i32 = arith.constant 0 : i32
    %c0_i32_0 = arith.constant 0 : i32
    %c0_i32_1 = arith.constant 0 : i32
    return %c0_i32, %c0_i32_0 : i32, i32
  }
  func.func @transform_7(%arg0: i32) -> (i32, i32) {
    %c0_i32 = arith.constant 0 : i32
    %c0_i32_0 = arith.constant 0 : i32
    return %arg0, %c0_i32 : i32, i32
  }
}

module attributes {stable_mosaic.version = 11 : i64} {
  func.func @_attn_block_kernel(%arg0: i32, %arg1: memref<1x8x64xbf16, #tpu.memory_space<vmem>>, %arg2: memref<1x64xf32, #tpu.memory_space<vmem>>, %arg3: memref<1x64xf32, #tpu.memory_space<vmem>>, %arg4: memref<64x192xbf16, #tpu.memory_space<vmem>>, %arg5: memref<64x64xbf16, #tpu.memory_space<vmem>>, %arg6: memref<1x64xf32, #tpu.memory_space<vmem>>, %arg7: memref<1x8x64xbf16, #tpu.memory_space<vmem>>, %arg8: memref<8x64xbf16, #tpu.memory_space<vmem>>) attributes {dimension_semantics = [#tpu.dimension_semantics<parallel>], iteration_bounds = array<i64: 2>, scalar_prefetch = 0 : i64, scratch_operands = 1 : i64, tpu.core_type = #tpu.core_type<tc>, window_params = [{transform_indices = @transform_0, window_bounds = array<i64: 1, 8, 64>}, {pipeline_mode = #tpu.pipeline_mode<synchronous>, transform_indices = @transform_1, window_bounds = array<i64: 1, 64>}, {pipeline_mode = #tpu.pipeline_mode<synchronous>, transform_indices = @transform_2, window_bounds = array<i64: 1, 64>}, {pipeline_mode = #tpu.pipeline_mode<synchronous>, transform_indices = @transform_3, window_bounds = array<i64: 64, 192>}, {pipeline_mode = #tpu.pipeline_mode<synchronous>, transform_indices = @transform_4, window_bounds = array<i64: 64, 64>}, {pipeline_mode = #tpu.pipeline_mode<synchronous>, transform_indices = @transform_5, window_bounds = array<i64: 1, 64>}, {transform_indices = @transform_6, window_bounds = array<i64: 1, 8, 64>}]} {
    %c0 = arith.constant 0 : index
    %c0_0 = arith.constant 0 : index
    %c0_1 = arith.constant 0 : index
    %0 = vector.load %arg1[%c0, %c0_0, %c0_1] : memref<1x8x64xbf16, #tpu.memory_space<vmem>>, vector<1x8x64xbf16>
    %1 = vector.shape_cast %0 : vector<1x8x64xbf16> to vector<8x64xbf16>
    %2 = arith.extf %1 : vector<8x64xbf16> to vector<8x64xf32>
    %c0_2 = arith.constant 0 : index
    %c0_3 = arith.constant 0 : index
    %3 = vector.load %arg2[%c0_2, %c0_3] : memref<1x64xf32, #tpu.memory_space<vmem>>, vector<1x64xf32>
    %c0_4 = arith.constant 0 : index
    %c0_5 = arith.constant 0 : index
    %4 = vector.load %arg3[%c0_4, %c0_5] : memref<1x64xf32, #tpu.memory_space<vmem>>, vector<1x64xf32>
    %cst = arith.constant dense<0.000000e+00> : vector<8xf32>
    %5 = vector.multi_reduction <add>, %2, %cst [1] : vector<8x64xf32> to vector<8xf32>
    %6 = vector.shape_cast %5 : vector<8xf32> to vector<8x1xf32>
    %cst_6 = arith.constant 6.400000e+01 : f32
    %7 = vector.broadcast %cst_6 : f32 to vector<8x1xf32>
    %8 = arith.divf %6, %7 : vector<8x1xf32>
    %9 = vector.broadcast %8 : vector<8x1xf32> to vector<8x64xf32>
    %10 = arith.subf %2, %9 : vector<8x64xf32>
    %11 = arith.mulf %10, %10 : vector<8x64xf32>
    %cst_7 = arith.constant dense<0.000000e+00> : vector<8xf32>
    %12 = vector.multi_reduction <add>, %11, %cst_7 [1] : vector<8x64xf32> to vector<8xf32>
    %13 = vector.shape_cast %12 : vector<8xf32> to vector<8x1xf32>
    %cst_8 = arith.constant 6.400000e+01 : f32
    %14 = vector.broadcast %cst_8 : f32 to vector<8x1xf32>
    %15 = arith.divf %13, %14 : vector<8x1xf32>
    %16 = vector.broadcast %8 : vector<8x1xf32> to vector<8x64xf32>
    %17 = arith.subf %2, %16 : vector<8x64xf32>
    %cst_9 = arith.constant 9.99999974E-6 : f32
    %18 = vector.broadcast %cst_9 : f32 to vector<8x1xf32>
    %19 = arith.addf %15, %18 : vector<8x1xf32>
    %20 = math.rsqrt %19 : vector<8x1xf32>
    %21 = vector.broadcast %20 : vector<8x1xf32> to vector<8x64xf32>
    %22 = arith.mulf %17, %21 : vector<8x64xf32>
    %23 = vector.broadcast %3 : vector<1x64xf32> to vector<8x64xf32>
    %24 = arith.mulf %23, %22 : vector<8x64xf32>
    %25 = vector.broadcast %4 : vector<1x64xf32> to vector<8x64xf32>
    %26 = arith.addf %24, %25 : vector<8x64xf32>
    %27 = arith.truncf %26 : vector<8x64xf32> to vector<8x64xbf16>
    %c0_10 = arith.constant 0 : index
    %c0_11 = arith.constant 0 : index
    %28 = vector.load %arg4[%c0_10, %c0_11] : memref<64x192xbf16, #tpu.memory_space<vmem>>, vector<64x192xbf16>
    %cst_12 = arith.constant dense<0.000000e+00> : vector<8x192xf32>
    %29 = tpu.matmul %27, %28, %cst_12 {dimension_numbers = #tpu.dot_dimension_numbers<[1], [0], [0], [1], [0, 0, 1, 1], [], []>} : vector<8x64xbf16>, vector<64x192xbf16>, vector<8x192xf32> -> vector<8x192xf32>
    %30 = arith.truncf %29 : vector<8x192xf32> to vector<8x192xbf16>
    %31 = tpu.iota {dimensions = array<i32: 0>} : vector<8x8xi32>
    %32 = tpu.iota {dimensions = array<i32: 1>} : vector<8x8xi32>
    %33 = arith.cmpi sle, %32, %31 : vector<8x8xi32>
    %34 = vector.extract_strided_slice %30 {offsets = [0, 0], sizes = [8, 16], strides = [1, 1]} : vector<8x192xbf16> to vector<8x16xbf16>
    %35 = vector.extract_strided_slice %30 {offsets = [0, 64], sizes = [8, 16], strides = [1, 1]} : vector<8x192xbf16> to vector<8x16xbf16>
    %36 = vector.extract_strided_slice %30 {offsets = [0, 128], sizes = [8, 16], strides = [1, 1]} : vector<8x192xbf16> to vector<8x16xbf16>
    %cst_13 = arith.constant dense<0.000000e+00> : vector<8x8xf32>
    %37 = tpu.matmul %34, %35, %cst_13 {dimension_numbers = #tpu.dot_dimension_numbers<[1], [1], [0], [0], [0, 0, 1, 0], [], []>} : vector<8x16xbf16>, vector<8x16xbf16>, vector<8x8xf32> -> vector<8x8xf32>
    %cst_14 = arith.constant -1.000000e+30 : f32
    %38 = vector.broadcast %cst_14 : f32 to vector<8x8xf32>
    %39 = arith.select %33, %37, %38 : vector<8x8xi1>, vector<8x8xf32>
    %cst_15 = arith.constant dense<0xFF800000> : vector<8xf32>
    %40 = vector.multi_reduction <maximumf>, %39, %cst_15 [1] : vector<8x8xf32> to vector<8xf32>
    %41 = vector.shape_cast %40 : vector<8xf32> to vector<8x1xf32>
    %42 = vector.broadcast %41 : vector<8x1xf32> to vector<8x8xf32>
    %43 = arith.subf %39, %42 : vector<8x8xf32>
    %44 = math.exp %43 : vector<8x8xf32>
    %cst_16 = arith.constant dense<0.000000e+00> : vector<8xf32>
    %45 = vector.multi_reduction <add>, %44, %cst_16 [1] : vector<8x8xf32> to vector<8xf32>
    %46 = vector.shape_cast %45 : vector<8xf32> to vector<8x1xf32>
    %47 = tpu.reciprocal %46 {approx = true} : vector<8x1xf32> -> vector<8x1xf32>
    %48 = vector.broadcast %47 : vector<8x1xf32> to vector<8x8xf32>
    %49 = arith.mulf %44, %48 : vector<8x8xf32>
    %50 = arith.truncf %49 : vector<8x8xf32> to vector<8x8xbf16>
    %cst_17 = arith.constant dense<0.000000e+00> : vector<8x16xf32>
    %51 = tpu.matmul %50, %36, %cst_17 {dimension_numbers = #tpu.dot_dimension_numbers<[1], [0], [0], [1], [0, 0, 1, 1], [], []>} : vector<8x8xbf16>, vector<8x16xbf16>, vector<8x16xf32> -> vector<8x16xf32>
    %52 = arith.truncf %51 : vector<8x16xf32> to vector<8x16xbf16>
    %c0_18 = arith.constant 0 : index
    %c0_19 = arith.constant 0 : index
    %53 = vector.load %arg8[%c0_18, %c0_19] : memref<8x64xbf16, #tpu.memory_space<vmem>>, vector<8x16xbf16>
    tpu.vector_store %arg8[%c0_18, %c0_19], %52 {strides = array<i32>} : memref<8x64xbf16, #tpu.memory_space<vmem>>, vector<8x16xbf16>,
    %54 = vector.extract_strided_slice %30 {offsets = [0, 16], sizes = [8, 16], strides = [1, 1]} : vector<8x192xbf16> to vector<8x16xbf16>
    %55 = vector.extract_strided_slice %30 {offsets = [0, 80], sizes = [8, 16], strides = [1, 1]} : vector<8x192xbf16> to vector<8x16xbf16>
    %56 = vector.extract_strided_slice %30 {offsets = [0, 144], sizes = [8, 16], strides = [1, 1]} : vector<8x192xbf16> to vector<8x16xbf16>
    %cst_20 = arith.constant dense<0.000000e+00> : vector<8x8xf32>
    %57 = tpu.matmul %54, %55, %cst_20 {dimension_numbers = #tpu.dot_dimension_numbers<[1], [1], [0], [0], [0, 0, 1, 0], [], []>} : vector<8x16xbf16>, vector<8x16xbf16>, vector<8x8xf32> -> vector<8x8xf32>
    %cst_21 = arith.constant -1.000000e+30 : f32
    %58 = vector.broadcast %cst_21 : f32 to vector<8x8xf32>
    %59 = arith.select %33, %57, %58 : vector<8x8xi1>, vector<8x8xf32>
    %cst_22 = arith.constant dense<0xFF800000> : vector<8xf32>
    %60 = vector.multi_reduction <maximumf>, %59, %cst_22 [1] : vector<8x8xf32> to vector<8xf32>
    %61 = vector.shape_cast %60 : vector<8xf32> to vector<8x1xf32>
    %62 = vector.broadcast %61 : vector<8x1xf32> to vector<8x8xf32>
    %63 = arith.subf %59, %62 : vector<8x8xf32>
    %64 = math.exp %63 : vector<8x8xf32>
    %cst_23 = arith.constant dense<0.000000e+00> : vector<8xf32>
    %65 = vector.multi_reduction <add>, %64, %cst_23 [1] : vector<8x8xf32> to vector<8xf32>
    %66 = vector.shape_cast %65 : vector<8xf32> to vector<8x1xf32>
    %67 = tpu.reciprocal %66 {approx = true} : vector<8x1xf32> -> vector<8x1xf32>
    %68 = vector.broadcast %67 : vector<8x1xf32> to vector<8x8xf32>
    %69 = arith.mulf %64, %68 : vector<8x8xf32>
    %70 = arith.truncf %69 : vector<8x8xf32> to vector<8x8xbf16>
    %cst_24 = arith.constant dense<0.000000e+00> : vector<8x16xf32>
    %71 = tpu.matmul %70, %56, %cst_24 {dimension_numbers = #tpu.dot_dimension_numbers<[1], [0], [0], [1], [0, 0, 1, 1], [], []>} : vector<8x8xbf16>, vector<8x16xbf16>, vector<8x16xf32> -> vector<8x16xf32>
    %72 = arith.truncf %71 : vector<8x16xf32> to vector<8x16xbf16>
    %c0_25 = arith.constant 0 : index
    %c16 = arith.constant 16 : index
    %73 = vector.load %arg8[%c0_25, %c16] : memref<8x64xbf16, #tpu.memory_space<vmem>>, vector<8x16xbf16>
    tpu.vector_store %arg8[%c0_25, %c16], %72 {strides = array<i32>} : memref<8x64xbf16, #tpu.memory_space<vmem>>, vector<8x16xbf16>,
    %74 = vector.extract_strided_slice %30 {offsets = [0, 32], sizes = [8, 16], strides = [1, 1]} : vector<8x192xbf16> to vector<8x16xbf16>
    %75 = vector.extract_strided_slice %30 {offsets = [0, 96], sizes = [8, 16], strides = [1, 1]} : vector<8x192xbf16> to vector<8x16xbf16>
    %76 = vector.extract_strided_slice %30 {offsets = [0, 160], sizes = [8, 16], strides = [1, 1]} : vector<8x192xbf16> to vector<8x16xbf16>
    %cst_26 = arith.constant dense<0.000000e+00> : vector<8x8xf32>
    %77 = tpu.matmul %74, %75, %cst_26 {dimension_numbers = #tpu.dot_dimension_numbers<[1], [1], [0], [0], [0, 0, 1, 0], [], []>} : vector<8x16xbf16>, vector<8x16xbf16>, vector<8x8xf32> -> vector<8x8xf32>
    %cst_27 = arith.constant -1.000000e+30 : f32
    %78 = vector.broadcast %cst_27 : f32 to vector<8x8xf32>
    %79 = arith.select %33, %77, %78 : vector<8x8xi1>, vector<8x8xf32>
    %cst_28 = arith.constant dense<0xFF800000> : vector<8xf32>
    %80 = vector.multi_reduction <maximumf>, %79, %cst_28 [1] : vector<8x8xf32> to vector<8xf32>
    %81 = vector.shape_cast %80 : vector<8xf32> to vector<8x1xf32>
    %82 = vector.broadcast %81 : vector<8x1xf32> to vector<8x8xf32>
    %83 = arith.subf %79, %82 : vector<8x8xf32>
    %84 = math.exp %83 : vector<8x8xf32>
    %cst_29 = arith.constant dense<0.000000e+00> : vector<8xf32>
    %85 = vector.multi_reduction <add>, %84, %cst_29 [1] : vector<8x8xf32> to vector<8xf32>
    %86 = vector.shape_cast %85 : vector<8xf32> to vector<8x1xf32>
    %87 = tpu.reciprocal %86 {approx = true} : vector<8x1xf32> -> vector<8x1xf32>
    %88 = vector.broadcast %87 : vector<8x1xf32> to vector<8x8xf32>
    %89 = arith.mulf %84, %88 : vector<8x8xf32>
    %90 = arith.truncf %89 : vector<8x8xf32> to vector<8x8xbf16>
    %cst_30 = arith.constant dense<0.000000e+00> : vector<8x16xf32>
    %91 = tpu.matmul %90, %76, %cst_30 {dimension_numbers = #tpu.dot_dimension_numbers<[1], [0], [0], [1], [0, 0, 1, 1], [], []>} : vector<8x8xbf16>, vector<8x16xbf16>, vector<8x16xf32> -> vector<8x16xf32>
    %92 = arith.truncf %91 : vector<8x16xf32> to vector<8x16xbf16>
    %c0_31 = arith.constant 0 : index
    %c32 = arith.constant 32 : index
    %93 = vector.load %arg8[%c0_31, %c32] : memref<8x64xbf16, #tpu.memory_space<vmem>>, vector<8x16xbf16>
    tpu.vector_store %arg8[%c0_31, %c32], %92 {strides = array<i32>} : memref<8x64xbf16, #tpu.memory_space<vmem>>, vector<8x16xbf16>,
    %94 = vector.extract_strided_slice %30 {offsets = [0, 48], sizes = [8, 16], strides = [1, 1]} : vector<8x192xbf16> to vector<8x16xbf16>
    %95 = vector.extract_strided_slice %30 {offsets = [0, 112], sizes = [8, 16], strides = [1, 1]} : vector<8x192xbf16> to vector<8x16xbf16>
    %96 = vector.extract_strided_slice %30 {offsets = [0, 176], sizes = [8, 16], strides = [1, 1]} : vector<8x192xbf16> to vector<8x16xbf16>
    %cst_32 = arith.constant dense<0.000000e+00> : vector<8x8xf32>
    %97 = tpu.matmul %94, %95, %cst_32 {dimension_numbers = #tpu.dot_dimension_numbers<[1], [1], [0], [0], [0, 0, 1, 0], [], []>} : vector<8x16xbf16>, vector<8x16xbf16>, vector<8x8xf32> -> vector<8x8xf32>
    %cst_33 = arith.constant -1.000000e+30 : f32
    %98 = vector.broadcast %cst_33 : f32 to vector<8x8xf32>
    %99 = arith.select %33, %97, %98 : vector<8x8xi1>, vector<8x8xf32>
    %cst_34 = arith.constant dense<0xFF800000> : vector<8xf32>
    %100 = vector.multi_reduction <maximumf>, %99, %cst_34 [1] : vector<8x8xf32> to vector<8xf32>
    %101 = vector.shape_cast %100 : vector<8xf32> to vector<8x1xf32>
    %102 = vector.broadcast %101 : vector<8x1xf32> to vector<8x8xf32>
    %103 = arith.subf %99, %102 : vector<8x8xf32>
    %104 = math.exp %103 : vector<8x8xf32>
    %cst_35 = arith.constant dense<0.000000e+00> : vector<8xf32>
    %105 = vector.multi_reduction <add>, %104, %cst_35 [1] : vector<8x8xf32> to vector<8xf32>
    %106 = vector.shape_cast %105 : vector<8xf32> to vector<8x1xf32>
    %107 = tpu.reciprocal %106 {approx = true} : vector<8x1xf32> -> vector<8x1xf32>
    %108 = vector.broadcast %107 : vector<8x1xf32> to vector<8x8xf32>
    %109 = arith.mulf %104, %108 : vector<8x8xf32>
    %110 = arith.truncf %109 : vector<8x8xf32> to vector<8x8xbf16>
    %cst_36 = arith.constant dense<0.000000e+00> : vector<8x16xf32>
    %111 = tpu.matmul %110, %96, %cst_36 {dimension_numbers = #tpu.dot_dimension_numbers<[1], [0], [0], [1], [0, 0, 1, 1], [], []>} : vector<8x8xbf16>, vector<8x16xbf16>, vector<8x16xf32> -> vector<8x16xf32>
    %112 = arith.truncf %111 : vector<8x16xf32> to vector<8x16xbf16>
    %c0_37 = arith.constant 0 : index
    %c48 = arith.constant 48 : index
    %113 = vector.load %arg8[%c0_37, %c48] : memref<8x64xbf16, #tpu.memory_space<vmem>>, vector<8x16xbf16>
    tpu.vector_store %arg8[%c0_37, %c48], %112 {strides = array<i32>} : memref<8x64xbf16, #tpu.memory_space<vmem>>, vector<8x16xbf16>,
    %c0_38 = arith.constant 0 : index
    %c0_39 = arith.constant 0 : index
    %114 = vector.load %arg8[%c0_38, %c0_39] : memref<8x64xbf16, #tpu.memory_space<vmem>>, vector<8x64xbf16>
    %c0_40 = arith.constant 0 : index
    %c0_41 = arith.constant 0 : index
    %115 = vector.load %arg5[%c0_40, %c0_41] : memref<64x64xbf16, #tpu.memory_space<vmem>>, vector<64x64xbf16>
    %cst_42 = arith.constant dense<0.000000e+00> : vector<8x64xf32>
    %116 = tpu.matmul %114, %115, %cst_42 {dimension_numbers = #tpu.dot_dimension_numbers<[1], [0], [0], [1], [0, 0, 1, 1], [], []>} : vector<8x64xbf16>, vector<64x64xbf16>, vector<8x64xf32> -> vector<8x64xf32>
    %c0_43 = arith.constant 0 : index
    %c0_44 = arith.constant 0 : index
    %117 = vector.load %arg6[%c0_43, %c0_44] : memref<1x64xf32, #tpu.memory_space<vmem>>, vector<1x64xf32>
    %118 = vector.broadcast %117 : vector<1x64xf32> to vector<8x64xf32>
    %119 = arith.addf %116, %118 : vector<8x64xf32>
    %120 = arith.extf %1 : vector<8x64xbf16> to vector<8x64xf32>
    %121 = arith.addf %119, %120 : vector<8x64xf32>
    %122 = arith.truncf %121 : vector<8x64xf32> to vector<8x64xbf16>
    %c0_45 = arith.constant 0 : index
    %c0_46 = arith.constant 0 : index
    %c0_47 = arith.constant 0 : index
    %123 = vector.load %arg7[%c0_45, %c0_46, %c0_47] : memref<1x8x64xbf16, #tpu.memory_space<vmem>>, vector<1x8x64xbf16>
    %124 = vector.shape_cast %123 : vector<1x8x64xbf16> to vector<8x64xbf16>
    %125 = vector.shape_cast %122 : vector<8x64xbf16> to vector<1x8x64xbf16>
    tpu.vector_store %arg7[%c0_45, %c0_46, %c0_47], %125 {strides = array<i32>} : memref<1x8x64xbf16, #tpu.memory_space<vmem>>, vector<1x8x64xbf16>,
    return
  }
  func.func @transform_0(%arg0: i32) -> (i32, i32, i32) {
    %c0_i32 = arith.constant 0 : i32
    %c0_i32_0 = arith.constant 0 : i32
    %c0_i32_1 = arith.constant 0 : i32
    return %arg0, %c0_i32, %c0_i32_0 : i32, i32, i32
  }
  func.func @transform_1(%arg0: i32) -> (i32, i32) {
    %c0_i32 = arith.constant 0 : i32
    %c0_i32_0 = arith.constant 0 : i32
    %c0_i32_1 = arith.constant 0 : i32
    return %c0_i32, %c0_i32_0 : i32, i32
  }
  func.func @transform_2(%arg0: i32) -> (i32, i32) {
    %c0_i32 = arith.constant 0 : i32
    %c0_i32_0 = arith.constant 0 : i32
    %c0_i32_1 = arith.constant 0 : i32
    return %c0_i32, %c0_i32_0 : i32, i32
  }
  func.func @transform_3(%arg0: i32) -> (i32, i32) {
    %c0_i32 = arith.constant 0 : i32
    %c0_i32_0 = arith.constant 0 : i32
    %c0_i32_1 = arith.constant 0 : i32
    return %c0_i32, %c0_i32_0 : i32, i32
  }
  func.func @transform_4(%arg0: i32) -> (i32, i32) {
    %c0_i32 = arith.constant 0 : i32
    %c0_i32_0 = arith.constant 0 : i32
    %c0_i32_1 = arith.constant 0 : i32
    return %c0_i32, %c0_i32_0 : i32, i32
  }
  func.func @transform_5(%arg0: i32) -> (i32, i32) {
    %c0_i32 = arith.constant 0 : i32
    %c0_i32_0 = arith.constant 0 : i32
    %c0_i32_1 = arith.constant 0 : i32
    return %c0_i32, %c0_i32_0 : i32, i32
  }
  func.func @transform_6(%arg0: i32) -> (i32, i32, i32) {
    %c0_i32 = arith.constant 0 : i32
    %c0_i32_0 = arith.constant 0 : i32
    %c0_i32_1 = arith.constant 0 : i32
    return %arg0, %c0_i32, %c0_i32_0 : i32, i32, i32
  }
}

module attributes {stable_mosaic.version = 11 : i64} {
  func.func @_ln_logits_kernel(%arg0: i32, %arg1: i32, %arg2: memref<16x64xbf16, #tpu.memory_space<vmem>>, %arg3: memref<1x64xf32, #tpu.memory_space<vmem>>, %arg4: memref<1x64xf32, #tpu.memory_space<vmem>>, %arg5: memref<64x128xbf16, #tpu.memory_space<vmem>>, %arg6: memref<16x128xbf16, #tpu.memory_space<vmem>>) attributes {dimension_semantics = [#tpu.dimension_semantics<parallel>, #tpu.dimension_semantics<parallel>], iteration_bounds = array<i64: 1, 1>, scalar_prefetch = 0 : i64, scratch_operands = 0 : i64, tpu.core_type = #tpu.core_type<tc>, window_params = [{transform_indices = @transform_0, window_bounds = array<i64: 16, 64>}, {pipeline_mode = #tpu.pipeline_mode<synchronous>, transform_indices = @transform_1, window_bounds = array<i64: 1, 64>}, {pipeline_mode = #tpu.pipeline_mode<synchronous>, transform_indices = @transform_2, window_bounds = array<i64: 1, 64>}, {transform_indices = @transform_3, window_bounds = array<i64: 64, 128>}, {transform_indices = @transform_4, window_bounds = array<i64: 16, 128>}]} {
    %c0 = arith.constant 0 : index
    %c0_0 = arith.constant 0 : index
    %0 = vector.load %arg2[%c0, %c0_0] : memref<16x64xbf16, #tpu.memory_space<vmem>>, vector<16x64xbf16>
    %1 = arith.extf %0 : vector<16x64xbf16> to vector<16x64xf32>
    %c0_1 = arith.constant 0 : index
    %c0_2 = arith.constant 0 : index
    %2 = vector.load %arg3[%c0_1, %c0_2] : memref<1x64xf32, #tpu.memory_space<vmem>>, vector<1x64xf32>
    %c0_3 = arith.constant 0 : index
    %c0_4 = arith.constant 0 : index
    %3 = vector.load %arg4[%c0_3, %c0_4] : memref<1x64xf32, #tpu.memory_space<vmem>>, vector<1x64xf32>
    %cst = arith.constant dense<0.000000e+00> : vector<16xf32>
    %4 = vector.multi_reduction <add>, %1, %cst [1] : vector<16x64xf32> to vector<16xf32>
    %5 = vector.shape_cast %4 : vector<16xf32> to vector<16x1xf32>
    %cst_5 = arith.constant 6.400000e+01 : f32
    %6 = vector.broadcast %cst_5 : f32 to vector<16x1xf32>
    %7 = arith.divf %5, %6 : vector<16x1xf32>
    %8 = vector.broadcast %7 : vector<16x1xf32> to vector<16x64xf32>
    %9 = arith.subf %1, %8 : vector<16x64xf32>
    %10 = arith.mulf %9, %9 : vector<16x64xf32>
    %cst_6 = arith.constant dense<0.000000e+00> : vector<16xf32>
    %11 = vector.multi_reduction <add>, %10, %cst_6 [1] : vector<16x64xf32> to vector<16xf32>
    %12 = vector.shape_cast %11 : vector<16xf32> to vector<16x1xf32>
    %cst_7 = arith.constant 6.400000e+01 : f32
    %13 = vector.broadcast %cst_7 : f32 to vector<16x1xf32>
    %14 = arith.divf %12, %13 : vector<16x1xf32>
    %15 = vector.broadcast %7 : vector<16x1xf32> to vector<16x64xf32>
    %16 = arith.subf %1, %15 : vector<16x64xf32>
    %cst_8 = arith.constant 9.99999974E-6 : f32
    %17 = vector.broadcast %cst_8 : f32 to vector<16x1xf32>
    %18 = arith.addf %14, %17 : vector<16x1xf32>
    %19 = math.rsqrt %18 : vector<16x1xf32>
    %20 = vector.broadcast %19 : vector<16x1xf32> to vector<16x64xf32>
    %21 = arith.mulf %16, %20 : vector<16x64xf32>
    %22 = vector.broadcast %2 : vector<1x64xf32> to vector<16x64xf32>
    %23 = arith.mulf %22, %21 : vector<16x64xf32>
    %24 = vector.broadcast %3 : vector<1x64xf32> to vector<16x64xf32>
    %25 = arith.addf %23, %24 : vector<16x64xf32>
    %26 = arith.truncf %25 : vector<16x64xf32> to vector<16x64xbf16>
    %c0_9 = arith.constant 0 : index
    %c0_10 = arith.constant 0 : index
    %27 = vector.load %arg5[%c0_9, %c0_10] : memref<64x128xbf16, #tpu.memory_space<vmem>>, vector<64x128xbf16>
    %cst_11 = arith.constant dense<0.000000e+00> : vector<16x128xf32>
    %28 = tpu.matmul %26, %27, %cst_11 {dimension_numbers = #tpu.dot_dimension_numbers<[1], [0], [0], [1], [0, 0, 1, 1], [], []>} : vector<16x64xbf16>, vector<64x128xbf16>, vector<16x128xf32> -> vector<16x128xf32>
    %29 = arith.truncf %28 : vector<16x128xf32> to vector<16x128xbf16>
    %c0_12 = arith.constant 0 : index
    %c0_13 = arith.constant 0 : index
    %30 = vector.load %arg6[%c0_12, %c0_13] : memref<16x128xbf16, #tpu.memory_space<vmem>>, vector<16x128xbf16>
    tpu.vector_store %arg6[%c0_12, %c0_13], %29 {strides = array<i32>} : memref<16x128xbf16, #tpu.memory_space<vmem>>, vector<16x128xbf16>,
    return
  }
  func.func @transform_0(%arg0: i32, %arg1: i32) -> (i32, i32) {
    %c0_i32 = arith.constant 0 : i32
    %c0_i32_0 = arith.constant 0 : i32
    return %arg0, %c0_i32 : i32, i32
  }
  func.func @transform_1(%arg0: i32, %arg1: i32) -> (i32, i32) {
    %c0_i32 = arith.constant 0 : i32
    %c0_i32_0 = arith.constant 0 : i32
    %c0_i32_1 = arith.constant 0 : i32
    return %c0_i32, %c0_i32_0 : i32, i32
  }
  func.func @transform_2(%arg0: i32, %arg1: i32) -> (i32, i32) {
    %c0_i32 = arith.constant 0 : i32
    %c0_i32_0 = arith.constant 0 : i32
    %c0_i32_1 = arith.constant 0 : i32
    return %c0_i32, %c0_i32_0 : i32, i32
  }
  func.func @transform_3(%arg0: i32, %arg1: i32) -> (i32, i32) {
    %c0_i32 = arith.constant 0 : i32
    %c0_i32_0 = arith.constant 0 : i32
    return %c0_i32, %arg1 : i32, i32
  }
  func.func @transform_4(%arg0: i32, %arg1: i32) -> (i32, i32) {
    %c0_i32 = arith.constant 0 : i32
    return %arg0, %arg1 : i32, i32
  }
}

</mosaic_0001>

<llo_original>
// kernel: _lambda_.9
$region0: #{_lambda_.9}
  #allocation0 [shape = 'u32[]', space=smem, size = 0x4, offset = 0x4, fixed_abs, tag = 'smem constant byte address 0x4 - core index']
  #allocation1 [shape = 'u32[144,128]{1,0:T(1,128)}', space=vmem, size = 0x12000, scoped, tag = 'internal scratch']
  %s0 = inlined_call_operand.vmem [shape: bf16[16,64], index: 0, kind: input, shape index: {}]
  %s1 = inlined_call_operand.vmem [shape: f32[1,64], index: 1, kind: input, shape index: {}]
  %s2 = inlined_call_operand.vmem [shape: f32[1,64], index: 2, kind: input, shape index: {}]
  %s3 = inlined_call_operand.vmem [shape: bf16[64,128], index: 3, kind: input, shape index: {}]
  %s4 = inlined_call_operand.hbm [shape: bf16[16,128], index: 4, kind: output, shape index: {}]
  %s5 = sld [smem:[#allocation0]]
  $region26: #{_lambda_.9} parent=0
    _
  %s7 = ssub.s32 1, %s5
  %s8 = scalar_select 0, %s7, %s5
  $region1: #{_lambda_.9} parent=0
    #allocation2 [shape = 'u8[4096]{0}', space=vmem, size = 0x1000, scoped, tag = 'output window, operand 0, single buffered']
    #allocation3 [shape = 's32[1]{0}', space=sflag, size = 0x4, scoped, tag = 'scoped memory for _lambda_.9']
    %9 = vsyncpa [#allocation3], 0
    // Predicated region
    $region2: #{_lambda_.9} parent=1 // pred_check
      _
    $region3: #{_lambda_.9} parent=1 // pred_check_branch
      %11 = sbr.rel (0) target = $region5
    $region4: #{_lambda_.9} parent=1 // pred_region
      _
    $region5: #{_lambda_.9} parent=1 // pred_fallthru
      _
    // Predicated region
    $region6: #{_lambda_.9} parent=1 // pred_check
      _
    $region7: #{_lambda_.9} parent=1 // pred_check_branch
      %13 = sbr.rel (0) target = $region9
    $region8: #{_lambda_.9} parent=1 // pred_region
      _
    $region9: #{_lambda_.9} parent=1 // pred_fallthru
      _
    // Predicated region
    $region10: #{_lambda_.9} parent=1 // pred_check
      _
    $region11: #{_lambda_.9} parent=1 // pred_check_branch
      %15 = sbr.rel (0) target = $region13
    $region12: #{_lambda_.9} parent=1 // pred_region
      _
    $region13: #{_lambda_.9} parent=1 // pred_fallthru
      _
    // Predicated region
    $region14: #{_lambda_.9} parent=1 // pred_check
      _
    $region15: #{_lambda_.9} parent=1 // pred_check_branch
      %17 = sbr.rel (0) target = $region17
    $region16: #{_lambda_.9} parent=1 // pred_region
      _
    $region17: #{_lambda_.9} parent=1 // pred_fallthru
      _
    %v19 = vld [vmem:[%s0] sm:$0xf]
    %v20 = vld [vmem:[%s0 + $0x4] sm:$0xf]
    %v21 = vunpack.c.l.bf16 %v19
    %v22 = vunpack.c.l.bf16 %v20
    %v23 = vld [vmem:[%s1] sm:$0x1]
    %v24 = vld [vmem:[%s2] sm:$0x1]
    %vm25 = vcmask 523264
    %v26 = vsel %vm25, %v21, 0.0
    %27 = vadd.xlane.f32.xlu0 %v26
    %v28 = vpop.xlane.xlu0 %27
    %v29 = vsel %vm25, %v22, 0.0
    %30 = vadd.xlane.f32.xlu0 %v29
    %v31 = vpop.xlane.xlu0 %30
    %v32 = vrcp.pop 64.0
    %v33 = vmul.f32 %v28, %v32
    %v34 = vmul.f32 %v31, %v32
    %v35 = vsub.f32 %v21, %v33
    %v36 = vsub.f32 %v22, %v34
    %v37 = vmul.f32 %v35, %v35
    %v38 = vmul.f32 %v36, %v36
    %v39 = vsel %vm25, %v37, 0.0
    %40 = vadd.xlane.f32.xlu0 %v39
    %v41 = vpop.xlane.xlu0 %40
    %v42 = vsel %vm25, %v38, 0.0
    %43 = vadd.xlane.f32.xlu0 %v42
    %v44 = vpop.xlane.xlu0 %43
    %v45 = vmul.f32 %v41, %v32
    %v46 = vmul.f32 %v44, %v32
    %v47 = vadd.f32 %v45, 1e-05
    %v48 = vadd.f32 %v46, 1e-05
    %v49 = vrsqrt.pop %v47
    %v50 = vrsqrt.pop %v48
    %v51 = vmul.f32 %v35, %v49
    %v52 = vmul.f32 %v36, %v50
    %v54 = vlaneseq
    %v55 = vshrl.u32 %v54, 7
    %v56 = vsub.s32 0, %v55
    %v57 = vrot.slane %v23, %v56
    %v59 = vmul.f32 %v57, %v51
    %v60 = vmul.f32 %v57, %v52
    %v62 = vlaneseq
    %v63 = vshrl.u32 %v62, 7
    %v64 = vsub.s32 0, %v63
    %v65 = vrot.slane %v24, %v64
    %v67 = vadd.f32 %v59, %v65
    %v68 = vadd.f32 %v60, %v65
    %v69 = vpack.c.bf16 %v68, %v67
    %v70 = vld [vmem:[%s3] sm:$0xf]
    %v71 = vld [vmem:[%s3 + $0x4] sm:$0xf]
    %v72 = vld [vmem:[%s3 + $0x8] sm:$0xf]
    %v73 = vld [vmem:[%s3 + $0xc] sm:$0xf]
    %v74 = vld [vmem:[%s3 + $0x10] sm:$0xf]
    %v75 = vld [vmem:[%s3 + $0x14] sm:$0xf]
    %v76 = vld [vmem:[%s3 + $0x18] sm:$0xf]
    %v77 = vld [vmem:[%s3 + $0x1c] sm:$0xf]
    %v86 = vunpack.c.l.b16 %v70
    %v87 = vunpack.c.l.b16 %v71
    %v88 = vunpack.c.l.b16 %v72
    %v89 = vunpack.c.l.b16 %v73
    %v90 = vunpack.c.l.b16 %v74
    %v91 = vunpack.c.l.b16 %v75
    %v92 = vunpack.c.l.b16 %v76
    %v93 = vunpack.c.l.b16 %v77
    %v94 = vpack.c.b16 %v87, %v86
    %v95 = vpack.c.b16 %v89, %v88
    %v96 = vpack.c.b16 %v91, %v90
    %v97 = vpack.c.b16 %v93, %v92
    %v103 = vsel %vm25, %v69, 0
    %105 = vmatprep.subr.bf16.mxu0 0
    %106 = vmatpush1.bf16.msra.mxu0 %v94
    %107 = vmatprep.subr.bf16.mxu0 0
    %108 = vmatpush1.bf16.msra.mxu0 %v95
    %109 = vmatprep.subr.bf16.mxu0 0
    %110 = vmatpush1.bf16.msra.mxu0 %v96
    %111 = vmatprep.subr.bf16.mxu0 0
    %112 = vmatpush1.bf16.msra.mxu0 %v97
    %113 = vmatprep.subr.bf16.mxu0 0
    %114 = vmatpush1.bf16.msra.mxu0 0
    %115 = vmatprep.subr.bf16.mxu0 0
    %116 = vmatpush1.bf16.msra.mxu0 0
    %117 = vmatprep.subr.bf16.mxu0 0
    %118 = vmatpush1.bf16.msra.mxu0 0
    %119 = vmatprep.subr.bf16.mxu0 0
    %120 = vmatpush1.bf16.msra.mxu0 0
    %121 = vmatprep.subr.bf16.mxu0 0
    %122 = vmatpush1.bf16.msra.mxu0 0
    %123 = vmatprep.subr.bf16.mxu0 0
    %124 = vmatpush1.bf16.msra.mxu0 0
    %125 = vmatprep.subr.bf16.mxu0 0
    %126 = vmatpush1.bf16.msra.mxu0 0
    %127 = vmatprep.subr.bf16.mxu0 0
    %128 = vmatpush1.bf16.msra.mxu0 0
    %129 = vmatprep.subr.bf16.mxu0 0
    %130 = vmatpush1.bf16.msra.mxu0 0
    %131 = vmatprep.subr.bf16.mxu0 0
    %132 = vmatpush1.bf16.msra.mxu0 0
    %133 = vmatprep.subr.bf16.mxu0 0
    %134 = vmatpush1.bf16.msra.mxu0 0
    %135 = vmatprep.subr.bf16.mxu0 0
    %136 = vmatpush1.bf16.msra.mxu0 0
    %137 = vmatprep.mubr.bf16.mxu0 0
    %138 = vmatmul.mubr.bf16.gmra.mrb[0].mxu0 %v103
    %v139 = vpop.f32.mrb[0].mxu0
    %v140 = vadd.f32 0.0, %v139
    %v141 = vpop.f32.mrb[0].mxu0
    %v142 = vpop.f32.mrb[0].mxu0
    %v143 = vadd.f32 0.0, %v142
    %v144 = vpop.f32.mrb[0].mxu0
    %145 = vdwg.mxu0
    %v146 = vpack.c.bf16 %v143, %v140
    %v148 = vunpack.c.l.b16 %v146
    %v149 = vunpack.c.h.b16 %v146
    %v150 = vpack.c.b16 %v148, %v148
    %v151 = vpack.c.b16 %v149, %v149
    %154 = vst [vmem:[#allocation2] sm:$0xf] %v150
    %155 = vst [vmem:[#allocation2 + $0x4] sm:$0xf] %v151
    // Predicated region
    $region18: #{_lambda_.9} parent=1 // pred_check
      _
    $region19: #{_lambda_.9} parent=1 // pred_check_branch
      %157 = sbr.rel (0) target = $region21
    $region20: #{_lambda_.9} parent=1 // pred_region
      %s159 = ssub.s32 128, 128
      %160 = vsyncadd [#allocation3], %s159
      %s161 = sshll.u32 [#allocation2], 4
      %s162 = int_to_ptr.vmem [resolvable:$true] %s161
      %167 = dma.vmem_to_hbm [thread:$0]  %s162, 128, %s4, [#allocation3], 64, 64, 4
    $region21: #{_lambda_.9} parent=1 // pred_fallthru
      _
    // Predicated region
    $region22: #{_lambda_.9} parent=1 // pred_check
      _
    $region23: #{_lambda_.9} parent=1 // pred_check_branch
      %169 = sbr.rel (0) target = $region25
    $region24: #{_lambda_.9} parent=1 // pred_region
      %170 = dma.done [#allocation3], 128
    $region25: #{_lambda_.9} parent=1 // pred_fallthru
      _
    %171 = vsyncpa [#allocation3], 1

// kernel: _lambda_.6
$region0: #{_lambda_.6}
  #allocation0 [shape = 'u32[]', space=smem, size = 0x4, offset = 0x4, fixed_abs, tag = 'smem constant byte address 0x4 - core index']
  #allocation1 [shape = 'u32[144,128]{1,0:T(1,128)}', space=vmem, size = 0x12000, scoped, tag = 'internal scratch']
  %s0 = inlined_call_operand.vmem [shape: bf16[16,64], index: 0, kind: input, shape index: {}, may-alias: {0,7}]
  %s1 = inlined_call_operand.vmem [shape: f32[1,64], index: 1, kind: input, shape index: {}]
  %s2 = inlined_call_operand.vmem [shape: f32[1,64], index: 2, kind: input, shape index: {}]
  %s3 = inlined_call_operand.vmem [shape: bf16[64,256], index: 3, kind: input, shape index: {}]
  %s4 = inlined_call_operand.vmem [shape: f32[1,256], index: 4, kind: input, shape index: {}]
  %s5 = inlined_call_operand.vmem [shape: bf16[256,64], index: 5, kind: input, shape index: {}]
  %s6 = inlined_call_operand.vmem [shape: f32[1,64], index: 6, kind: input, shape index: {}]
  %s7 = inlined_call_operand.vmem [shape: bf16[16,64], index: 7, kind: output, shape index: {}, may-alias: {0,7}]
  %s8 = sld [smem:[#allocation0]]
  $region38: #{_lambda_.6} parent=0
    _
  %s10 = ssub.s32 1, %s8
  %s11 = scalar_select 0, %s10, %s8
  // Predicated region
  $region2: #{_lambda_.6} parent=0 // pred_check
    _
  $region3: #{_lambda_.6} parent=0 // pred_check_branch
    %13 = sbr.rel (0) target = $region5
  $region4: #{_lambda_.6} parent=0 // pred_region
    _
  $region5: #{_lambda_.6} parent=0 // pred_fallthru
    _
  // Predicated region
  $region6: #{_lambda_.6} parent=0 // pred_check
    _
  $region7: #{_lambda_.6} parent=0 // pred_check_branch
    %15 = sbr.rel (0) target = $region9
  $region8: #{_lambda_.6} parent=0 // pred_region
    _
  $region9: #{_lambda_.6} parent=0 // pred_fallthru
    _
  // Predicated region
  $region10: #{_lambda_.6} parent=0 // pred_check
    _
  $region11: #{_lambda_.6} parent=0 // pred_check_branch
    %17 = sbr.rel (0) target = $region13
  $region12: #{_lambda_.6} parent=0 // pred_region
    _
  $region13: #{_lambda_.6} parent=0 // pred_fallthru
    _
  // Predicated region
  $region14: #{_lambda_.6} parent=0 // pred_check
    _
  $region15: #{_lambda_.6} parent=0 // pred_check_branch
    %19 = sbr.rel (0) target = $region17
  $region16: #{_lambda_.6} parent=0 // pred_region
    _
  $region17: #{_lambda_.6} parent=0 // pred_fallthru
    _
  // Predicated region
  $region18: #{_lambda_.6} parent=0 // pred_check
    _
  $region19: #{_lambda_.6} parent=0 // pred_check_branch
    %21 = sbr.rel (0) target = $region21
  $region20: #{_lambda_.6} parent=0 // pred_region
    _
  $region21: #{_lambda_.6} parent=0 // pred_fallthru
    _
  // Predicated region
  $region22: #{_lambda_.6} parent=0 // pred_check
    _
  $region23: #{_lambda_.6} parent=0 // pred_check_branch
    %23 = sbr.rel (0) target = $region25
  $region24: #{_lambda_.6} parent=0 // pred_region
    _
  $region25: #{_lambda_.6} parent=0 // pred_fallthru
    _
  // Predicated region
  $region26: #{_lambda_.6} parent=0 // pred_check
    _
  $region27: #{_lambda_.6} parent=0 // pred_check_branch
    %25 = sbr.rel (0) target = $region29
  $region28: #{_lambda_.6} parent=0 // pred_region
    _
  $region29: #{_lambda_.6} parent=0 // pred_fallthru
    _
  %v27 = vld [vmem:[%s0] sm:$0xf]
  %v28 = vld [vmem:[%s0 + $0x4] sm:$0xf]
  %v29 = vunpack.c.l.bf16 %v27
  %v30 = vunpack.c.l.bf16 %v28
  %v31 = vld [vmem:[%s1] sm:$0x1]
  %v32 = vld [vmem:[%s2] sm:$0x1]
  %vm33 = vcmask 523264
  %v34 = vsel %vm33, %v29, 0.0
  %35 = vadd.xlane.f32.xlu0 %v34
  %v36 = vpop.xlane.xlu0 %35
  %v37 = vsel %vm33, %v30, 0.0
  %38 = vadd.xlane.f32.xlu0 %v37
  %v39 = vpop.xlane.xlu0 %38
  %v40 = vrcp.pop 64.0
  %v41 = vmul.f32 %v36, %v40
  %v42 = vmul.f32 %v39, %v40
  %v43 = vsub.f32 %v29, %v41
  %v44 = vsub.f32 %v30, %v42
  %v45 = vmul.f32 %v43, %v43
  %v46 = vmul.f32 %v44, %v44
  %v47 = vsel %vm33, %v45, 0.0
  %48 = vadd.xlane.f32.xlu0 %v47
  %v49 = vpop.xlane.xlu0 %48
  %v50 = vsel %vm33, %v46, 0.0
  %51 = vadd.xlane.f32.xlu0 %v50
  %v52 = vpop.xlane.xlu0 %51
  %v53 = vmul.f32 %v49, %v40
  %v54 = vmul.f32 %v52, %v40
  %v55 = vadd.f32 %v53, 1e-05
  %v56 = vadd.f32 %v54, 1e-05
  %v57 = vrsqrt.pop %v55
  %v58 = vrsqrt.pop %v56
  %v59 = vmul.f32 %v43, %v57
  %v60 = vmul.f32 %v44, %v58
  %v62 = vlaneseq
  %v63 = vshrl.u32 %v62, 7
  %v64 = vsub.s32 0, %v63
  %v65 = vrot.slane %v31, %v64
  %v67 = vmul.f32 %v65, %v59
  %v68 = vmul.f32 %v65, %v60
  %v70 = vlaneseq
  %v71 = vshrl.u32 %v70, 7
  %v72 = vsub.s32 0, %v71
  %v73 = vrot.slane %v32, %v72
  %v75 = vadd.f32 %v67, %v73
  %v76 = vadd.f32 %v68, %v73
  %v77 = vpack.c.bf16 %v76, %v75
  %v78 = vld [vmem:[%s3] sm:$0xff]
  %v79 = vld [vmem:[%s3 + $0x8] sm:$0xff]
  %v80 = vld [vmem:[%s3 + $0x10] sm:$0xff]
  %v81 = vld [vmem:[%s3 + $0x18] sm:$0xff]
  %v82 = vld [vmem:[%s3 + $0x20] sm:$0xff]
  %v83 = vld [vmem:[%s3 + $0x28] sm:$0xff]
  %v84 = vld [vmem:[%s3 + $0x30] sm:$0xff]
  %v85 = vld [vmem:[%s3 + $0x38] sm:$0xff]
  %v86 = vld [vmem:[%s4] sm:$0x3]
  %v88 = vlaneseq
  %v89 = vshrl.u32 %v88, 7
  %v90 = vsub.s32 0, %v89
  %v91 = vrot.slane %v86, %v90
  %v92 = vlaneseq
  %v93 = vshrl.u32 %v92, 7
  %v94 = vsub.s32 1, %v93
  %v95 = vrot.slane %v86, %v94
  %v106 = vunpack.c.l.b16 %v78
  %v107 = vunpack.c.h.b16 %v78
  %v108 = vunpack.c.l.b16 %v79
  %v109 = vunpack.c.h.b16 %v79
  %v110 = vunpack.c.l.b16 %v80
  %v111 = vunpack.c.h.b16 %v80
  %v112 = vunpack.c.l.b16 %v81
  %v113 = vunpack.c.h.b16 %v81
  %v114 = vunpack.c.l.b16 %v82
  %v115 = vunpack.c.h.b16 %v82
  %v116 = vunpack.c.l.b16 %v83
  %v117 = vunpack.c.h.b16 %v83
  %v118 = vunpack.c.l.b16 %v84
  %v119 = vunpack.c.h.b16 %v84
  %v120 = vunpack.c.l.b16 %v85
  %v121 = vunpack.c.h.b16 %v85
  %v122 = vpack.c.b16 %v108, %v106
  %v123 = vpack.c.b16 %v109, %v107
  %v124 = vpack.c.b16 %v112, %v110
  %v125 = vpack.c.b16 %v113, %v111
  %v126 = vpack.c.b16 %v116, %v114
  %v127 = vpack.c.b16 %v117, %v115
  %v128 = vpack.c.b16 %v120, %v118
  %v129 = vpack.c.b16 %v121, %v119
  %v139 = vsel %vm33, %v77, 0
  %141 = vmatprep.subr.bf16.mxu0 %v123
  %142 = vmatpush1.bf16.msra.mxu0 %v122
  %143 = vmatprep.subr.bf16.mxu0 %v125
  %144 = vmatpush1.bf16.msra.mxu0 %v124
  %145 = vmatprep.subr.bf16.mxu0 %v127
  %146 = vmatpush1.bf16.msra.mxu0 %v126
  %147 = vmatprep.subr.bf16.mxu0 %v129
  %148 = vmatpush1.bf16.msra.mxu0 %v128
  %149 = vmatprep.subr.bf16.mxu0 0
  %150 = vmatpush1.bf16.msra.mxu0 0
  %151 = vmatprep.subr.bf16.mxu0 0
  %152 = vmatpush1.bf16.msra.mxu0 0
  %153 = vmatprep.subr.bf16.mxu0 0
  %154 = vmatpush1.bf16.msra.mxu0 0
  %155 = vmatprep.subr.bf16.mxu0 0
  %156 = vmatpush1.bf16.msra.mxu0 0
  %157 = vmatprep.subr.bf16.mxu0 0
  %158 = vmatpush1.bf16.msra.mxu0 0
  %159 = vmatprep.subr.bf16.mxu0 0
  %160 = vmatpush1.bf16.msra.mxu0 0
  %161 = vmatprep.subr.bf16.mxu0 0
  %162 = vmatpush1.bf16.msra.mxu0 0
  %163 = vmatprep.subr.bf16.mxu0 0
  %164 = vmatpush1.bf16.msra.mxu0 0
  %165 = vmatprep.subr.bf16.mxu0 0
  %166 = vmatpush1.bf16.msra.mxu0 0
  %167 = vmatprep.subr.bf16.mxu0 0
  %168 = vmatpush1.bf16.msra.mxu0 0
  %169 = vmatprep.subr.bf16.mxu0 0
  %170 = vmatpush1.bf16.msra.mxu0 0
  %171 = vmatprep.subr.bf16.mxu0 0
  %172 = vmatpush1.bf16.msra.mxu0 0
  %173 = vmatprep.mubr.bf16.mxu0 0
  %174 = vmatmul.mubr.bf16.gmra.mrb[0].mxu0 %v139
  %v175 = vpop.f32.mrb[0].mxu0
  %v176 = vadd.f32 %v91, %v175
  %v177 = vpop.f32.mrb[0].mxu0
  %v178 = vadd.f32 %v95, %v177
  %v179 = vpop.f32.mrb[0].mxu0
  %v180 = vadd.f32 %v91, %v179
  %v181 = vpop.f32.mrb[0].mxu0
  %v182 = vadd.f32 %v95, %v181
  %183 = vdwg.mxu0
  %v184 = vmul.f32 %v176, 0.5
  %v185 = vmul.f32 %v178, 0.5
  %v186 = vmul.f32 %v180, 0.5
  %v187 = vmul.f32 %v182, 0.5
  %v188 = vmul.f32 %v176, %v176
  %v189 = vmul.f32 %v178, %v178
  %v190 = vmul.f32 %v180, %v180
  %v191 = vmul.f32 %v182, %v182
  %v192 = vmul.f32 %v176, %v188
  %v193 = vmul.f32 %v178, %v189
  %v194 = vmul.f32 %v180, %v190
  %v195 = vmul.f32 %v182, %v191
  %v196 = vmul.f32 %v192, 0.044715
  %v197 = vmul.f32 %v193, 0.044715
  %v198 = vmul.f32 %v194, 0.044715
  %v199 = vmul.f32 %v195, 0.044715
  %v200 = vadd.f32 %v176, %v196
  %v201 = vadd.f32 %v178, %v197
  %v202 = vadd.f32 %v180, %v198
  %v203 = vadd.f32 %v182, %v199
  %v204 = vmul.f32 %v200, 0.7978846
  %v205 = vmul.f32 %v201, 0.7978846
  %v206 = vmul.f32 %v202, 0.7978846
  %v207 = vmul.f32 %v203, 0.7978846
  %v208 = vtanh.pop %v204
  %v209 = vtanh.pop %v205
  %v210 = vtanh.pop %v206
  %v211 = vtanh.pop %v207
  %v212 = vadd.f32 %v208, 1.0
  %v213 = vadd.f32 %v209, 1.0
  %v214 = vadd.f32 %v210, 1.0
  %v215 = vadd.f32 %v211, 1.0
  %v216 = vmul.f32 %v184, %v212
  %v217 = vmul.f32 %v185, %v213
  %v218 = vmul.f32 %v186, %v214
  %v219 = vmul.f32 %v187, %v215
  %v220 = vpack.c.bf16 %v218, %v216
  %v221 = vpack.c.bf16 %v219, %v217
  %v222 = vld [vmem:[%s5] sm:$0xf]
  %v223 = vld [vmem:[%s5 + $0x4] sm:$0xf]
  %v224 = vld [vmem:[%s5 + $0x8] sm:$0xf]
  %v225 = vld [vmem:[%s5 + $0xc] sm:$0xf]
  %v226 = vld [vmem:[%s5 + $0x10] sm:$0xf]
  %v227 = vld [vmem:[%s5 + $0x14] sm:$0xf]
  %v228 = vld [vmem:[%s5 + $0x18] sm:$0xf]
  %v229 = vld [vmem:[%s5 + $0x1c] sm:$0xf]
  %v230 = vld [vmem:[%s5 + $0x20] sm:$0xf]
  %v231 = vld [vmem:[%s5 + $0x24] sm:$0xf]
  %v232 = vld [vmem:[%s5 + $0x28] sm:$0xf]
  %v233 = vld [vmem:[%s5 + $0x2c] sm:$0xf]
  %v234 = vld [vmem:[%s5 + $0x30] sm:$0xf]
  %v235 = vld [vmem:[%s5 + $0x34] sm:$0xf]
  %v236 = vld [vmem:[%s5 + $0x38] sm:$0xf]
  %v237 = vld [vmem:[%s5 + $0x3c] sm:$0xf]
  %v238 = vld [vmem:[%s5 + $0x40] sm:$0xf]
  %v239 = vld [vmem:[%s5 + $0x44] sm:$0xf]
  %v240 = vld [vmem:[%s5 + $0x48] sm:$0xf]
  %v241 = vld [vmem:[%s5 + $0x4c] sm:$0xf]
  %v242 = vld [vmem:[%s5 + $0x50] sm:$0xf]
  %v243 = vld [vmem:[%s5 + $0x54] sm:$0xf]
  %v244 = vld [vmem:[%s5 + $0x58] sm:$0xf]
  %v245 = vld [vmem:[%s5 + $0x5c] sm:$0xf]
  %v246 = vld [vmem:[%s5 + $0x60] sm:$0xf]
  %v247 = vld [vmem:[%s5 + $0x64] sm:$0xf]
  %v248 = vld [vmem:[%s5 + $0x68] sm:$0xf]
  %v249 = vld [vmem:[%s5 + $0x6c] sm:$0xf]
  %v250 = vld [vmem:[%s5 + $0x70] sm:$0xf]
  %v251 = vld [vmem:[%s5 + $0x74] sm:$0xf]
  %v252 = vld [vmem:[%s5 + $0x78] sm:$0xf]
  %v253 = vld [vmem:[%s5 + $0x7c] sm:$0xf]
  %v254 = vld [vmem:[%s6] sm:$0x1]
  %v256 = vlaneseq
  %v257 = vshrl.u32 %v256, 7
  %v258 = vsub.s32 0, %v257
  %v259 = vrot.slane %v254, %v258
  %v293 = vunpack.c.l.b16 %v222
  %v294 = vunpack.c.l.b16 %v223
  %v295 = vunpack.c.l.b16 %v224
  %v296 = vunpack.c.l.b16 %v225
  %v297 = vunpack.c.l.b16 %v226
  %v298 = vunpack.c.l.b16 %v227
  %v299 = vunpack.c.l.b16 %v228
  %v300 = vunpack.c.l.b16 %v229
  %v301 = vunpack.c.l.b16 %v230
  %v302 = vunpack.c.l.b16 %v231
  %v303 = vunpack.c.l.b16 %v232
  %v304 = vunpack.c.l.b16 %v233
  %v305 = vunpack.c.l.b16 %v234
  %v306 = vunpack.c.l.b16 %v235
  %v307 = vunpack.c.l.b16 %v236
  %v308 = vunpack.c.l.b16 %v237
  %v309 = vunpack.c.l.b16 %v238
  %v310 = vunpack.c.l.b16 %v239
  %v311 = vunpack.c.l.b16 %v240
  %v312 = vunpack.c.l.b16 %v241
  %v313 = vunpack.c.l.b16 %v242
  %v314 = vunpack.c.l.b16 %v243
  %v315 = vunpack.c.l.b16 %v244
  %v316 = vunpack.c.l.b16 %v245
  %v317 = vunpack.c.l.b16 %v246
  %v318 = vunpack.c.l.b16 %v247
  %v319 = vunpack.c.l.b16 %v248
  %v320 = vunpack.c.l.b16 %v249
  %v321 = vunpack.c.l.b16 %v250
  %v322 = vunpack.c.l.b16 %v251
  %v323 = vunpack.c.l.b16 %v252
  %v324 = vunpack.c.l.b16 %v253
  %v325 = vpack.c.b16 %v294, %v293
  %v326 = vpack.c.b16 %v296, %v295
  %v327 = vpack.c.b16 %v298, %v297
  %v328 = vpack.c.b16 %v300, %v299
  %v329 = vpack.c.b16 %v302, %v301
  %v330 = vpack.c.b16 %v304, %v303
  %v331 = vpack.c.b16 %v306, %v305
  %v332 = vpack.c.b16 %v308, %v307
  %v333 = vpack.c.b16 %v310, %v309
  %v334 = vpack.c.b16 %v312, %v311
  %v335 = vpack.c.b16 %v314, %v313
  %v336 = vpack.c.b16 %v316, %v315
  %v337 = vpack.c.b16 %v318, %v317
  %v338 = vpack.c.b16 %v320, %v319
  %v339 = vpack.c.b16 %v322, %v321
  %v340 = vpack.c.b16 %v324, %v323
  %357 = vmatprep.subr.bf16.mxu0 0
  %358 = vmatpush1.bf16.msra.mxu0 %v325
  %359 = vmatprep.subr.bf16.mxu0 0
  %360 = vmatpush1.bf16.msra.mxu0 %v326
  %361 = vmatprep.subr.bf16.mxu0 0
  %362 = vmatpush1.bf16.msra.mxu0 %v327
  %363 = vmatprep.subr.bf16.mxu0 0
  %364 = vmatpush1.bf16.msra.mxu0 %v328
  %365 = vmatprep.subr.bf16.mxu0 0
  %366 = vmatpush1.bf16.msra.mxu0 %v329
  %367 = vmatprep.subr.bf16.mxu0 0
  %368 = vmatpush1.bf16.msra.mxu0 %v330
  %369 = vmatprep.subr.bf16.mxu0 0
  %370 = vmatpush1.bf16.msra.mxu0 %v331
  %371 = vmatprep.subr.bf16.mxu0 0
  %372 = vmatpush1.bf16.msra.mxu0 %v332
  %373 = vmatprep.subr.bf16.mxu0 0
  %374 = vmatpush1.bf16.msra.mxu0 %v333
  %375 = vmatprep.subr.bf16.mxu0 0
  %376 = vmatpush1.bf16.msra.mxu0 %v334
  %377 = vmatprep.subr.bf16.mxu0 0
  %378 = vmatpush1.bf16.msra.mxu0 %v335
  %379 = vmatprep.subr.bf16.mxu0 0
  %380 = vmatpush1.bf16.msra.mxu0 %v336
  %381 = vmatprep.subr.bf16.mxu0 0
  %382 = vmatpush1.bf16.msra.mxu0 %v337
  %383 = vmatprep.subr.bf16.mxu0 0
  %384 = vmatpush1.bf16.msra.mxu0 %v338
  %385 = vmatprep.subr.bf16.mxu0 0
  %386 = vmatpush1.bf16.msra.mxu0 %v339
  %387 = vmatprep.subr.bf16.mxu0 0
  %388 = vmatpush1.bf16.msra.mxu0 %v340
  %389 = vmatprep.mubr.bf16.mxu0 %v221
  %390 = vmatmul.mubr.bf16.gmra.mrb[0].mxu0 %v220
  %v391 = vpop.f32.mrb[0].mxu0
  %v392 = vadd.f32 %v259, %v391
  %v393 = vpop.f32.mrb[0].mxu0
  %v394 = vpop.f32.mrb[0].mxu0
  %v395 = vadd.f32 %v259, %v394
  %v396 = vpop.f32.mrb[0].mxu0
  %397 = vdwg.mxu0
  %v398 = vadd.f32 %v392, %v29
  %v399 = vadd.f32 %v395, %v30
  %v400 = vpack.c.bf16 %v399, %v398
  %v402 = vunpack.c.l.b16 %v400
  %v403 = vunpack.c.h.b16 %v400
  %v404 = vpack.c.b16 %v402, %v402
  %v405 = vpack.c.b16 %v403, %v403
  %vm408 = vcmask 519168
  %409 = vst.msk [vmem:[%s7] sm:$0xf] %vm408, %v404
  %410 = vst.msk [vmem:[%s7 + $0x4] sm:$0xf] %vm408, %v405
  // Predicated region
  $region30: #{_lambda_.6} parent=0 // pred_check
    _
  $region31: #{_lambda_.6} parent=0 // pred_check_branch
    %412 = sbr.rel (0) target = $region33
  $region32: #{_lambda_.6} parent=0 // pred_region
    _
  $region33: #{_lambda_.6} parent=0 // pred_fallthru
    _
  // Predicated region
  $region34: #{_lambda_.6} parent=0 // pred_check
    _
  $region35: #{_lambda_.6} parent=0 // pred_check_branch
    %414 = sbr.rel (0) target = $region37
  $region36: #{_lambda_.6} parent=0 // pred_region
    _
  $region37: #{_lambda_.6} parent=0 // pred_fallthru
    _

// kernel: _lambda_.5
$region0: #{_lambda_.5}
  #allocation0 [shape = 'u32[]', space=smem, size = 0x4, offset = 0x4, fixed_abs, tag = 'smem constant byte address 0x4 - core index']
  #allocation1 [shape = 'u32[144,128]{1,0:T(1,128)}', space=vmem, size = 0x12000, scoped, tag = 'internal scratch']
  #allocation2 [shape = 'bf16[8,64]{1,0:T(8,128)(2,1)}', space=vmem, size = 0x800, scoped, tag = 'scratch operand']
  %s0 = inlined_call_operand.vmem [shape: bf16[2,8,64], index: 0, kind: input, shape index: {}, may-alias: {0,6}]
  %s1 = inlined_call_operand.vmem [shape: f32[1,64], index: 1, kind: input, shape index: {}]
  %s2 = inlined_call_operand.vmem [shape: f32[1,64], index: 2, kind: input, shape index: {}]
  %s3 = inlined_call_operand.vmem [shape: bf16[64,192], index: 3, kind: input, shape index: {}]
  %s4 = inlined_call_operand.vmem [shape: bf16[64,64], index: 4, kind: input, shape index: {}]
  %s5 = inlined_call_operand.vmem [shape: f32[1,64], index: 5, kind: input, shape index: {}]
  %s6 = inlined_call_operand.vmem [shape: bf16[2,8,64], index: 6, kind: output, shape index: {}, may-alias: {0,6}]
  %s7 = sld [smem:[#allocation0]]
  $region57: #{_lambda_.5} parent=0
    _
  %s9 = ssub.s32 1, %s7
  %s10 = scalar_select 0, %s9, %s7
  loop: start=0, step=1, limit=4
  $region2: #{_lambda_.5} parent=0 // loop_pre_header
    _
  $region3: #{_lambda_.5} parent=0 // loop_header
    %s12 = sphi 0, %s16
    %p13 = scmp.ge.s32.totalorder %s12, 4
    %s22 = sphi 0, %s24
    %s25 = sphi 0, %s22
    %s26 = sphi 0, %s25
    %s42 = sphi 0, %s26
    %s46 = sphi 0, %s46
    %s48 = sphi 0, %s46
    %s49 = sphi 0, %s48
    %s63 = sphi 0, %s49
    %s67 = sphi 0, %s67
    %s69 = sphi 0, %s67
    %s70 = sphi 0, %s69
    %s84 = sphi 0, %s70
    %s88 = sphi 0, %s88
    %s90 = sphi 0, %s88
    %s91 = sphi 0, %s90
    %s105 = sphi 0, %s91
    %s109 = sphi 0, %s109
    %s111 = sphi 0, %s109
    %s112 = sphi 0, %s111
    %s126 = sphi 0, %s112
    %s130 = sphi 0, %s130
    %s132 = sphi 0, %s130
    %s133 = sphi 0, %s132
    %s147 = sphi 0, %s133
    %s153 = sphi 0, %s155
    %s156 = sphi 0, %s153
    %s157 = sphi 0, %s156
    %s173 = sphi 0, %s157
  $region4: #{_lambda_.5} parent=0 // loop_header_branch
    %15 = sbr.rel (%p13) target = $region8
  $region5: #{_lambda_.5} parent=0 // loop_body
    %s17 = ssub.s32 %s12, 1
    %s18 = ssub.s32 %s12, 2
    %s19 = sadd.s32 %s12, 1
    %s20 = ssub.s32 %s12, %s19
    %p21 = scmp.eq.s32.totalorder %s20, 0
    %s23 = sadd.s32 %s22, 1
    %s24 = scalar_select %p21, %s22, %s23
    %p27 = pneg %p21
    %p28 = scmp.eq.s32.totalorder %s12, 1
    %p29 = por %p27, %p28
    %p30 = scmp.ne.s32.totalorder %s22, %s25
    %p31 = scmp.eq.s32.totalorder %s12, 0
    %p32 = por %p30, %p31
    %p33 = scmp.ne.s32.totalorder %s22, %s25
    %p34 = scmp.eq.s32.totalorder %s17, 1
    %p35 = por %p33, %p34
    %p36 = scmp.ne.s32.totalorder %s25, %s26
    %p37 = scmp.eq.s32.totalorder %s17, 0
    %p38 = por %p36, %p37
    %p39 = scmp.ne.s32.totalorder %s25, %s26
    %p40 = scmp.eq.s32.totalorder %s18, 1
    %p41 = por %p39, %p40
    %p43 = scmp.ne.s32.totalorder %s26, %s42
    %p44 = scmp.eq.s32.totalorder %s18, 0
    %p45 = por %p43, %p44
    %s47 = sadd.s32 %s46, 1
    %p50 = scmp.eq.s32.totalorder %s12, 1
    %p51 = scmp.ne.s32.totalorder %s46, %s48
    %p52 = scmp.eq.s32.totalorder %s12, 0
    %p53 = por %p51, %p52
    %p54 = scmp.ne.s32.totalorder %s46, %s48
    %p55 = scmp.eq.s32.totalorder %s17, 1
    %p56 = por %p54, %p55
    %p57 = scmp.ne.s32.totalorder %s48, %s49
    %p58 = scmp.eq.s32.totalorder %s17, 0
    %p59 = por %p57, %p58
    %p60 = scmp.ne.s32.totalorder %s48, %s49
    %p61 = scmp.eq.s32.totalorder %s18, 1
    %p62 = por %p60, %p61
    %p64 = scmp.ne.s32.totalorder %s49, %s63
    %p65 = scmp.eq.s32.totalorder %s18, 0
    %p66 = por %p64, %p65
    %s68 = sadd.s32 %s67, 1
    %p71 = scmp.eq.s32.totalorder %s12, 1
    %p72 = scmp.ne.s32.totalorder %s67, %s69
    %p73 = scmp.eq.s32.totalorder %s12, 0
    %p74 = por %p72, %p73
    %p75 = scmp.ne.s32.totalorder %s67, %s69
    %p76 = scmp.eq.s32.totalorder %s17, 1
    %p77 = por %p75, %p76
    %p78 = scmp.ne.s32.totalorder %s69, %s70
    %p79 = scmp.eq.s32.totalorder %s17, 0
    %p80 = por %p78, %p79
    %p81 = scmp.ne.s32.totalorder %s69, %s70
    %p82 = scmp.eq.s32.totalorder %s18, 1
    %p83 = por %p81, %p82
    %p85 = scmp.ne.s32.totalorder %s70, %s84
    %p86 = scmp.eq.s32.totalorder %s18, 0
    %p87 = por %p85, %p86
    %s89 = sadd.s32 %s88, 1
    %p92 = scmp.eq.s32.totalorder %s12, 1
    %p93 = scmp.ne.s32.totalorder %s88, %s90
    %p94 = scmp.eq.s32.totalorder %s12, 0
    %p95 = por %p93, %p94
    %p96 = scmp.ne.s32.totalorder %s88, %s90
    %p97 = scmp.eq.s32.totalorder %s17, 1
    %p98 = por %p96, %p97
    %p99 = scmp.ne.s32.totalorder %s90, %s91
    %p100 = scmp.eq.s32.totalorder %s17, 0
    %p101 = por %p99, %p100
    %p102 = scmp.ne.s32.totalorder %s90, %s91
    %p103 = scmp.eq.s32.totalorder %s18, 1
    %p104 = por %p102, %p103
    %p106 = scmp.ne.s32.totalorder %s91, %s105
    %p107 = scmp.eq.s32.totalorder %s18, 0
    %p108 = por %p106, %p107
    %s110 = sadd.s32 %s109, 1
    %p113 = scmp.eq.s32.totalorder %s12, 1
    %p114 = scmp.ne.s32.totalorder %s109, %s111
    %p115 = scmp.eq.s32.totalorder %s12, 0
    %p116 = por %p114, %p115
    %p117 = scmp.ne.s32.totalorder %s109, %s111
    %p118 = scmp.eq.s32.totalorder %s17, 1
    %p119 = por %p117, %p118
    %p120 = scmp.ne.s32.totalorder %s111, %s112
    %p121 = scmp.eq.s32.totalorder %s17, 0
    %p122 = por %p120, %p121
    %p123 = scmp.ne.s32.totalorder %s111, %s112
    %p124 = scmp.eq.s32.totalorder %s18, 1
    %p125 = por %p123, %p124
    %p127 = scmp.ne.s32.totalorder %s112, %s126
    %p128 = scmp.eq.s32.totalorder %s18, 0
    %p129 = por %p127, %p128
    %s131 = sadd.s32 %s130, 1
    %p134 = scmp.eq.s32.totalorder %s12, 1
    %p135 = scmp.ne.s32.totalorder %s130, %s132
    %p136 = scmp.eq.s32.totalorder %s12, 0
    %p137 = por %p135, %p136
    %p138 = scmp.ne.s32.totalorder %s130, %s132
    %p139 = scmp.eq.s32.totalorder %s17, 1
    %p140 = por %p138, %p139
    %p141 = scmp.ne.s32.totalorder %s132, %s133
    %p142 = scmp.eq.s32.totalorder %s17, 0
    %p143 = por %p141, %p142
    %p144 = scmp.ne.s32.totalorder %s132, %s133
    %p145 = scmp.eq.s32.totalorder %s18, 1
    %p146 = por %p144, %p145
    %p148 = scmp.ne.s32.totalorder %s133, %s147
    %p149 = scmp.eq.s32.totalorder %s18, 0
    %p150 = por %p148, %p149
    %s151 = ssub.s32 %s12, %s19
    %p152 = scmp.eq.s32.totalorder %s151, 0
    %s154 = sadd.s32 %s153, 1
    %s155 = scalar_select %p152, %s153, %s154
    %p158 = pneg %p152
    %p159 = scmp.eq.s32.totalorder %s12, 1
    %p160 = por %p158, %p159
    %p161 = scmp.ne.s32.totalorder %s153, %s156
    %p162 = scmp.eq.s32.totalorder %s12, 0
    %p163 = por %p161, %p162
    %p164 = scmp.ne.s32.totalorder %s153, %s156
    %p165 = scmp.eq.s32.totalorder %s17, 1
    %p166 = por %p164, %p165
    %p167 = scmp.ne.s32.totalorder %s156, %s157
    %p168 = scmp.eq.s32.totalorder %s17, 0
    %p169 = por %p167, %p168
    %p170 = scmp.ne.s32.totalorder %s156, %s157
    %p171 = scmp.eq.s32.totalorder %s18, 1
    %p172 = por %p170, %p171
    %p174 = scmp.ne.s32.totalorder %s157, %s173
    %p175 = scmp.eq.s32.totalorder %s18, 0
    %p176 = por %p174, %p175
    %p177 = scmp.le.s32.totalorder 1, %s12
    %p178 = scmp.lt.s32.totalorder %s12, 3
    %p179 = pnand %p177, %p178
    %p180 = pneg %p179
    // Predicated region
    $region9: #{_lambda_.5} parent=5 // pred_check
      _
    $region10: #{_lambda_.5} parent=5 // pred_check_branch
      %182 = sbr.rel (%p179) target = $region12
    $region11: #{_lambda_.5} parent=5 // pred_region
      %s183 = ssub.s32 %s12, 1
      // Predicated region
      $region13: #{_lambda_.5} parent=11 // pred_check
        %p184 = pneg %p59
      $region14: #{_lambda_.5} parent=11 // pred_check_branch
        %186 = sbr.rel (%p184) target = $region16
      $region15: #{_lambda_.5} parent=11 // pred_region
        _
      $region16: #{_lambda_.5} parent=11 // pred_fallthru
        _
      // Predicated region
      $region17: #{_lambda_.5} parent=11 // pred_check
        %p187 = pneg %p80
      $region18: #{_lambda_.5} parent=11 // pred_check_branch
        %189 = sbr.rel (%p187) target = $region20
      $region19: #{_lambda_.5} parent=11 // pred_region
        _
      $region20: #{_lambda_.5} parent=11 // pred_fallthru
        _
      // Predicated region
      $region21: #{_lambda_.5} parent=11 // pred_check
        %p190 = pneg %p101
      $region22: #{_lambda_.5} parent=11 // pred_check_branch
        %192 = sbr.rel (%p190) target = $region24
      $region23: #{_lambda_.5} parent=11 // pred_region
        _
      $region24: #{_lambda_.5} parent=11 // pred_fallthru
        _
      // Predicated region
      $region25: #{_lambda_.5} parent=11 // pred_check
        %p193 = pneg %p122
      $region26: #{_lambda_.5} parent=11 // pred_check_branch
        %195 = sbr.rel (%p193) target = $region28
      $region27: #{_lambda_.5} parent=11 // pred_region
        _
      $region28: #{_lambda_.5} parent=11 // pred_fallthru
        _
      // Predicated region
      $region29: #{_lambda_.5} parent=11 // pred_check
        %p196 = pneg %p143
      $region30: #{_lambda_.5} parent=11 // pred_check_branch
        %198 = sbr.rel (%p196) target = $region32
      $region31: #{_lambda_.5} parent=11 // pred_region
        _
      $region32: #{_lambda_.5} parent=11 // pred_fallthru
        _
    $region12: #{_lambda_.5} parent=5 // pred_fallthru
      _
    %p199 = scmp.lt.s32.totalorder %s12, 2
    // Predicated region
    $region33: #{_lambda_.5} parent=5 // pred_check
      %p200 = pneg %p199
    $region34: #{_lambda_.5} parent=5 // pred_check_branch
      %202 = sbr.rel (%p200) target = $region36
    $region35: #{_lambda_.5} parent=5 // pred_region
      // Predicated region
      $region37: #{_lambda_.5} parent=35 // pred_check
        %p203 = pneg %p32
      $region38: #{_lambda_.5} parent=35 // pred_check_branch
        %205 = sbr.rel (%p203) target = $region40
      $region39: #{_lambda_.5} parent=35 // pred_region
        %p206 = scmp.lt.s32.totalorder %s12, 1
        %s207 = scalar_select %p206, %s12, 1
        %s208 = smul.addr %s207, 4
        %s209 = scalar_lea.vmem %s0, %s208
      $region40: #{_lambda_.5} parent=35 // pred_fallthru
        _
    $region36: #{_lambda_.5} parent=5 // pred_fallthru
      _
    %p210 = scmp.le.s32.totalorder 1, %s12
    %p211 = scmp.lt.s32.totalorder %s12, 3
    %p212 = pnand %p210, %p211
    %p213 = pneg %p212
    // Predicated region
    $region41: #{_lambda_.5} parent=5 // pred_check
      _
    $region42: #{_lambda_.5} parent=5 // pred_check_branch
      %215 = sbr.rel (%p212) target = $region44
    $region43: #{_lambda_.5} parent=5 // pred_region
      %s216 = ssub.s32 %s12, 1
      %p217 = scmp.lt.s32.totalorder %s17, 1
      %s218 = scalar_select %p217, %s17, 1
      %s219 = smul.addr %s218, 4
      %s220 = scalar_lea.vmem %s0, %s219
      %p221 = pneg %p38
      %p222 = pneg %p35
      %p223 = pneg %p59
      %p224 = pneg %p56
      %p225 = pneg %p80
      %p226 = pneg %p77
      %p227 = pneg %p101
      %p228 = pneg %p98
      %p229 = pneg %p122
      %p230 = pneg %p119
      %p231 = pneg %p143
      %p232 = pneg %p140
      %p233 = pneg %p169
      %p234 = pneg %p166
      %p235 = scmp.lt.s32.totalorder %s17, 1
      %s236 = scalar_select %p235, %s17, 1
      %s237 = smul.addr %s236, 4
      %s238 = scalar_lea.vmem %s6, %s237
      %p239 = scmp.lt.s32.totalorder %s17, 1
      %s240 = scalar_select %p239, %s17, 1
      %s241 = smul.addr %s240, 4
      %s242 = scalar_lea.vmem %s0, %s241
      %p243 = scmp.lt.s32.totalorder %s17, 1
      %s244 = scalar_select %p243, %s17, 1
      %s245 = smul.addr %s244, 4
      %s246 = scalar_lea.vmem %s6, %s245
      %v248 = vld [vmem:[%s242] sm:$0xf]
      %v249 = vunpack.c.l.bf16 %v248
      %v250 = vld [vmem:[%s1] sm:$0x1]
      %v251 = vld [vmem:[%s2] sm:$0x1]
      %vm252 = vcmask 523264
      %v253 = vsel %vm252, %v249, 0.0
      %254 = vadd.xlane.f32.xlu0 %v253
      %v255 = vpop.xlane.xlu0 %254
      %v256 = vrcp.pop 64.0
      %v257 = vmul.f32 %v255, %v256
      %v258 = vsub.f32 %v249, %v257
      %v259 = vmul.f32 %v258, %v258
      %v260 = vsel %vm252, %v259, 0.0
      %261 = vadd.xlane.f32.xlu0 %v260
      %v262 = vpop.xlane.xlu0 %261
      %v263 = vmul.f32 %v262, %v256
      %v264 = vadd.f32 %v263, 1e-05
      %v265 = vrsqrt.pop %v264
      %v266 = vmul.f32 %v258, %v265
      %v268 = vlaneseq
      %v269 = vshrl.u32 %v268, 7
      %v270 = vsub.s32 0, %v269
      %v271 = vrot.slane %v250, %v270
      %v273 = vmul.f32 %v271, %v266
      %v275 = vlaneseq
      %v276 = vshrl.u32 %v275, 7
      %v277 = vsub.s32 0, %v276
      %v278 = vrot.slane %v251, %v277
      %v280 = vadd.f32 %v273, %v278
      %v281 = vpack.c.bf16 %v280, %v280
      %v282 = vld [vmem:[%s3] sm:$0xff]
      %v283 = vld [vmem:[%s3 + $0x8] sm:$0xff]
      %v284 = vld [vmem:[%s3 + $0x10] sm:$0xff]
      %v285 = vld [vmem:[%s3 + $0x18] sm:$0xff]
      %v286 = vld [vmem:[%s3 + $0x20] sm:$0xff]
      %v287 = vld [vmem:[%s3 + $0x28] sm:$0xff]
      %v288 = vld [vmem:[%s3 + $0x30] sm:$0xff]
      %v289 = vld [vmem:[%s3 + $0x38] sm:$0xff]
      %v298 = vunpack.c.l.b16 %v282
      %v299 = vunpack.c.h.b16 %v282
      %v300 = vunpack.c.l.b16 %v283
      %v301 = vunpack.c.h.b16 %v283
      %v302 = vunpack.c.l.b16 %v284
      %v303 = vunpack.c.h.b16 %v284
      %v304 = vunpack.c.l.b16 %v285
      %v305 = vunpack.c.h.b16 %v285
      %v306 = vunpack.c.l.b16 %v286
      %v307 = vunpack.c.h.b16 %v286
      %v308 = vunpack.c.l.b16 %v287
      %v309 = vunpack.c.h.b16 %v287
      %v310 = vunpack.c.l.b16 %v288
      %v311 = vunpack.c.h.b16 %v288
      %v312 = vunpack.c.l.b16 %v289
      %v313 = vunpack.c.h.b16 %v289
      %v314 = vpack.c.b16 %v300, %v298
      %v315 = vpack.c.b16 %v301, %v299
      %v316 = vpack.c.b16 %v304, %v302
      %v317 = vpack.c.b16 %v305, %v303
      %v318 = vpack.c.b16 %v308, %v306
      %v319 = vpack.c.b16 %v309, %v307
      %v320 = vpack.c.b16 %v312, %v310
      %v321 = vpack.c.b16 %v313, %v311
      %v331 = vsel %vm252, %v281, 0
      %333 = vmatprep.subr.bf16.mxu0 %v315
      %334 = vmatpush1.bf16.msra.mxu0 %v314
      %335 = vmatprep.subr.bf16.mxu0 %v317
      %336 = vmatpush1.bf16.msra.mxu0 %v316
      %337 = vmatprep.subr.bf16.mxu0 %v319
      %338 = vmatpush1.bf16.msra.mxu0 %v318
      %339 = vmatprep.subr.bf16.mxu0 %v321
      %340 = vmatpush1.bf16.msra.mxu0 %v320
      %341 = vmatprep.subr.bf16.mxu0 0
      %342 = vmatpush1.bf16.msra.mxu0 0
      %343 = vmatprep.subr.bf16.mxu0 0
      %344 = vmatpush1.bf16.msra.mxu0 0
      %345 = vmatprep.subr.bf16.mxu0 0
      %346 = vmatpush1.bf16.msra.mxu0 0
      %347 = vmatprep.subr.bf16.mxu0 0
      %348 = vmatpush1.bf16.msra.mxu0 0
      %349 = vmatprep.subr.bf16.mxu0 0
      %350 = vmatpush1.bf16.msra.mxu0 0
      %351 = vmatprep.subr.bf16.mxu0 0
      %352 = vmatpush1.bf16.msra.mxu0 0
      %353 = vmatprep.subr.bf16.mxu0 0
      %354 = vmatpush1.bf16.msra.mxu0 0
      %355 = vmatprep.subr.bf16.mxu0 0
      %356 = vmatpush1.bf16.msra.mxu0 0
      %357 = vmatprep.subr.bf16.mxu0 0
      %358 = vmatpush1.bf16.msra.mxu0 0
      %359 = vmatprep.subr.bf16.mxu0 0
      %360 = vmatpush1.bf16.msra.mxu0 0
      %361 = vmatprep.subr.bf16.mxu0 0
      %362 = vmatpush1.bf16.msra.mxu0 0
      %363 = vmatprep.subr.bf16.mxu0 0
      %364 = vmatpush1.bf16.msra.mxu0 0
      %365 = vmatprep.mubr.bf16.mxu0 0
      %366 = vmatmul.mubr.bf16.gmra.mrb[0].mxu0 %v331
      %v367 = vpop.f32.mrb[0].mxu0
      %v368 = vadd.f32 0.0, %v367
      %v369 = vpop.f32.mrb[0].mxu0
      %v370 = vadd.f32 0.0, %v369
      %v371 = vpop.f32.mrb[0].mxu0
      %v372 = vpop.f32.mrb[0].mxu0
      %373 = vdwg.mxu0
      %v374 = vpack.c.bf16 %v368, %v368
      %v375 = vpack.c.bf16 %v370, %v370
      %v376 = vlaneseq
      %v377 = vshrl.u32 %v376, 7
      %v378 = vlaneseq
      %v379 = vand.u32 %v378, 127
      %vm380 = vcmp.le.s32.totalorder %v379, %v377
      %382 = vrot.lane.b32.xlu0 %v374, 64
      %v383 = vpop.permute.xlu0 %382
      %vm384 = vcmask 130048
      %v386 = vsel %vm384, %v374, 0
      %v389 = vsel %vm384, %v383, 0
      %391 = vmatprep.subr.bf16.mxu0 0
      %392 = vmatpush1.bf16.xpose.msra.mxu0 %v389
      %393 = vmatprep.subr.bf16.mxu0 0
      %394 = vmatpush1.bf16.xpose.msra.mxu0 0
      %395 = vmatprep.subr.bf16.mxu0 0
      %396 = vmatpush1.bf16.xpose.msra.mxu0 0
      %397 = vmatprep.subr.bf16.mxu0 0
      %398 = vmatpush1.bf16.xpose.msra.mxu0 0
      %399 = vmatprep.subr.bf16.mxu0 0
      %400 = vmatpush1.bf16.xpose.msra.mxu0 0
      %401 = vmatprep.subr.bf16.mxu0 0
      %402 = vmatpush1.bf16.xpose.msra.mxu0 0
      %403 = vmatprep.subr.bf16.mxu0 0
      %404 = vmatpush1.bf16.xpose.msra.mxu0 0
      %405 = vmatprep.subr.bf16.mxu0 0
      %406 = vmatpush1.bf16.xpose.msra.mxu0 0
      %407 = vmatprep.subr.bf16.mxu0 0
      %408 = vmatpush1.bf16.xpose.msra.mxu0 0
      %409 = vmatprep.subr.bf16.mxu0 0
      %410 = vmatpush1.bf16.xpose.msra.mxu0 0
      %411 = vmatprep.subr.bf16.mxu0 0
      %412 = vmatpush1.bf16.xpose.msra.mxu0 0
      %413 = vmatprep.subr.bf16.mxu0 0
      %414 = vmatpush1.bf16.xpose.msra.mxu0 0
      %415 = vmatprep.subr.bf16.mxu0 0
      %416 = vmatpush1.bf16.xpose.msra.mxu0 0
      %417 = vmatprep.subr.bf16.mxu0 0
      %418 = vmatpush1.bf16.xpose.msra.mxu0 0
      %419 = vmatprep.subr.bf16.mxu0 0
      %420 = vmatpush1.bf16.xpose.msra.mxu0 0
      %421 = vmatprep.subr.bf16.mxu0 0
      %422 = vmatpush1.bf16.xpose.msra.mxu0 0
      %423 = vmatprep.mubr.bf16.mxu0 0
      %424 = vmatmul.mubr.bf16.gmra.mrb[0].mxu0 %v386
      %v425 = vpop.f32.mrb[0].mxu0
      %v426 = vadd.f32 0.0, %v425
      %v427 = vpop.f32.mrb[0].mxu0
      %v428 = vpop.f32.mrb[0].mxu0
      %v429 = vpop.f32.mrb[0].mxu0
      %430 = vdwg.mxu0
      %v431 = vsel %vm380, %v426, -1e+30
      %vm432 = vcmask 64512
      %v433 = vsel %vm432, %v431, -inf
      %434 = vmax.xlane.f32.xlu0 %v433
      %v435 = vpop.xlane.xlu0 %434
      %v436 = vsub.f32 %v431, %v435
      %v437 = vmul.f32 %v436, 1.442695
      %v438 = vpow.pop %v437
      %v439 = vsel %vm432, %v438, 0.0
      %440 = vadd.xlane.f32.xlu0 %v439
      %v441 = vpop.xlane.xlu0 %440
      %v442 = vrcp.pop %v441
      %v443 = vmul.f32 %v438, %v442
      %v444 = vpack.c.bf16 %v443, %v443
      %v446 = vsel %vm432, %v444, 0
      %vm448 = vcmask 1043456
      %v450 = vsel %vm448, %v375, 0
      %452 = vmatprep.subr.bf16.mxu0 0
      %453 = vmatpush1.bf16.msra.mxu0 %v450
      %454 = vmatprep.subr.bf16.mxu0 0
      %455 = vmatpush1.bf16.msra.mxu0 0
      %456 = vmatprep.subr.bf16.mxu0 0
      %457 = vmatpush1.bf16.msra.mxu0 0
      %458 = vmatprep.subr.bf16.mxu0 0
      %459 = vmatpush1.bf16.msra.mxu0 0
      %460 = vmatprep.subr.bf16.mxu0 0
      %461 = vmatpush1.bf16.msra.mxu0 0
      %462 = vmatprep.subr.bf16.mxu0 0
      %463 = vmatpush1.bf16.msra.mxu0 0
      %464 = vmatprep.subr.bf16.mxu0 0
      %465 = vmatpush1.bf16.msra.mxu0 0
      %466 = vmatprep.subr.bf16.mxu0 0
      %467 = vmatpush1.bf16.msra.mxu0 0
      %468 = vmatprep.subr.bf16.mxu0 0
      %469 = vmatpush1.bf16.msra.mxu0 0
      %470 = vmatprep.subr.bf16.mxu0 0
      %471 = vmatpush1.bf16.msra.mxu0 0
      %472 = vmatprep.subr.bf16.mxu0 0
      %473 = vmatpush1.bf16.msra.mxu0 0
      %474 = vmatprep.subr.bf16.mxu0 0
      %475 = vmatpush1.bf16.msra.mxu0 0
      %476 = vmatprep.subr.bf16.mxu0 0
      %477 = vmatpush1.bf16.msra.mxu0 0
      %478 = vmatprep.subr.bf16.mxu0 0
      %479 = vmatpush1.bf16.msra.mxu0 0
      %480 = vmatprep.subr.bf16.mxu0 0
      %481 = vmatpush1.bf16.msra.mxu0 0
      %482 = vmatprep.subr.bf16.mxu0 0
      %483 = vmatpush1.bf16.msra.mxu0 0
      %484 = vmatprep.mubr.bf16.mxu0 0
      %485 = vmatmul.mubr.bf16.gmra.mrb[0].mxu0 %v446
      %v486 = vpop.f32.mrb[0].mxu0
      %v487 = vadd.f32 0.0, %v486
      %v488 = vpop.f32.mrb[0].mxu0
      %v489 = vpop.f32.mrb[0].mxu0
      %v490 = vpop.f32.mrb[0].mxu0
      %491 = vdwg.mxu0
      %v492 = vpack.c.bf16 %v487, %v487
      %vm493 = vcmask 125952
      %494 = vst.msk [vmem:[#allocation2] sm:$0xf] %vm493, %v492
      %495 = vrot.lane.b32.xlu0 %v374, 112
      %v496 = vpop.permute.xlu0 %495
      %497 = vrot.lane.b32.xlu0 %v374, 48
      %v498 = vpop.permute.xlu0 %497
      %v500 = vsel %vm384, %v496, 0
      %v503 = vsel %vm384, %v498, 0
      %505 = vmatprep.subr.bf16.mxu0 0
      %506 = vmatpush1.bf16.xpose.msra.mxu0 %v503
      %507 = vmatprep.subr.bf16.mxu0 0
      %508 = vmatpush1.bf16.xpose.msra.mxu0 0
      %509 = vmatprep.subr.bf16.mxu0 0
      %510 = vmatpush1.bf16.xpose.msra.mxu0 0
      %511 = vmatprep.subr.bf16.mxu0 0
      %512 = vmatpush1.bf16.xpose.msra.mxu0 0
      %513 = vmatprep.subr.bf16.mxu0 0
      %514 = vmatpush1.bf16.xpose.msra.mxu0 0
      %515 = vmatprep.subr.bf16.mxu0 0
      %516 = vmatpush1.bf16.xpose.msra.mxu0 0
      %517 = vmatprep.subr.bf16.mxu0 0
      %518 = vmatpush1.bf16.xpose.msra.mxu0 0
      %519 = vmatprep.subr.bf16.mxu0 0
      %520 = vmatpush1.bf16.xpose.msra.mxu0 0
      %521 = vmatprep.subr.bf16.mxu0 0
      %522 = vmatpush1.bf16.xpose.msra.mxu0 0
      %523 = vmatprep.subr.bf16.mxu0 0
      %524 = vmatpush1.bf16.xpose.msra.mxu0 0
      %525 = vmatprep.subr.bf16.mxu0 0
      %526 = vmatpush1.bf16.xpose.msra.mxu0 0
      %527 = vmatprep.subr.bf16.mxu0 0
      %528 = vmatpush1.bf16.xpose.msra.mxu0 0
      %529 = vmatprep.subr.bf16.mxu0 0
      %530 = vmatpush1.bf16.xpose.msra.mxu0 0
      %531 = vmatprep.subr.bf16.mxu0 0
      %532 = vmatpush1.bf16.xpose.msra.mxu0 0
      %533 = vmatprep.subr.bf16.mxu0 0
      %534 = vmatpush1.bf16.xpose.msra.mxu0 0
      %535 = vmatprep.subr.bf16.mxu0 0
      %536 = vmatpush1.bf16.xpose.msra.mxu0 0
      %537 = vmatprep.mubr.bf16.mxu0 0
      %538 = vmatmul.mubr.bf16.gmra.mrb[0].mxu0 %v500
      %v539 = vpop.f32.mrb[0].mxu0
      %v540 = vadd.f32 0.0, %v539
      %v541 = vpop.f32.mrb[0].mxu0
      %v542 = vpop.f32.mrb[0].mxu0
      %v543 = vpop.f32.mrb[0].mxu0
      %544 = vdwg.mxu0
      %v545 = vsel %vm380, %v540, -1e+30
      %v546 = vsel %vm432, %v545, -inf
      %547 = vmax.xlane.f32.xlu0 %v546
      %v548 = vpop.xlane.xlu0 %547
      %v549 = vsub.f32 %v545, %v548
      %v550 = vmul.f32 %v549, 1.442695
      %v551 = vpow.pop %v550
      %v552 = vsel %vm432, %v551, 0.0
      %553 = vadd.xlane.f32.xlu0 %v552
      %v554 = vpop.xlane.xlu0 %553
      %v555 = vrcp.pop %v554
      %v556 = vmul.f32 %v551, %v555
      %v557 = vpack.c.bf16 %v556, %v556
      %559 = vrot.lane.b32.xlu0 %v375, 112
      %v560 = vpop.permute.xlu0 %559
      %v562 = vsel %vm432, %v557, 0
      %v565 = vsel %vm448, %v560, 0
      %567 = vmatprep.subr.bf16.mxu0 0
      %568 = vmatpush1.bf16.msra.mxu0 %v565
      %569 = vmatprep.subr.bf16.mxu0 0
      %570 = vmatpush1.bf16.msra.mxu0 0
      %571 = vmatprep.subr.bf16.mxu0 0
      %572 = vmatpush1.bf16.msra.mxu0 0
      %573 = vmatprep.subr.bf16.mxu0 0
      %574 = vmatpush1.bf16.msra.mxu0 0
      %575 = vmatprep.subr.bf16.mxu0 0
      %576 = vmatpush1.bf16.msra.mxu0 0
      %577 = vmatprep.subr.bf16.mxu0 0
      %578 = vmatpush1.bf16.msra.mxu0 0
      %579 = vmatprep.subr.bf16.mxu0 0
      %580 = vmatpush1.bf16.msra.mxu0 0
      %581 = vmatprep.subr.bf16.mxu0 0
      %582 = vmatpush1.bf16.msra.mxu0 0
      %583 = vmatprep.subr.bf16.mxu0 0
      %584 = vmatpush1.bf16.msra.mxu0 0
      %585 = vmatprep.subr.bf16.mxu0 0
      %586 = vmatpush1.bf16.msra.mxu0 0
      %587 = vmatprep.subr.bf16.mxu0 0
      %588 = vmatpush1.bf16.msra.mxu0 0
      %589 = vmatprep.subr.bf16.mxu0 0
      %590 = vmatpush1.bf16.msra.mxu0 0
      %591 = vmatprep.subr.bf16.mxu0 0
      %592 = vmatpush1.bf16.msra.mxu0 0
      %593 = vmatprep.subr.bf16.mxu0 0
      %594 = vmatpush1.bf16.msra.mxu0 0
      %595 = vmatprep.subr.bf16.mxu0 0
      %596 = vmatpush1.bf16.msra.mxu0 0
      %597 = vmatprep.subr.bf16.mxu0 0
      %598 = vmatpush1.bf16.msra.mxu0 0
      %599 = vmatprep.mubr.bf16.mxu0 0
      %600 = vmatmul.mubr.bf16.gmra.mrb[0].mxu0 %v562
      %v601 = vpop.f32.mrb[0].mxu0
      %v602 = vadd.f32 0.0, %v601
      %v603 = vpop.f32.mrb[0].mxu0
      %v604 = vpop.f32.mrb[0].mxu0
      %v605 = vpop.f32.mrb[0].mxu0
      %606 = vdwg.mxu0
      %v607 = vpack.c.bf16 %v602, %v602
      %v609 = vunpack.c.l.b16 %v607
      %v610 = vpack.c.b16 %v609, %v609
      %611 = vrot.lane.b32.xlu0 %v610, 16
      %v612 = vpop.permute.xlu0 %611
      %vm614 = vcmask 257152
      %615 = vst.msk [vmem:[#allocation2] sm:$0xf] %vm614, %v612
      %616 = vrot.lane.b32.xlu0 %v374, 96
      %v617 = vpop.permute.xlu0 %616
      %618 = vrot.lane.b32.xlu0 %v374, 32
      %v619 = vpop.permute.xlu0 %618
      %v621 = vsel %vm384, %v617, 0
      %v624 = vsel %vm384, %v619, 0
      %626 = vmatprep.subr.bf16.mxu0 0
      %627 = vmatpush1.bf16.xpose.msra.mxu0 %v624
      %628 = vmatprep.subr.bf16.mxu0 0
      %629 = vmatpush1.bf16.xpose.msra.mxu0 0
      %630 = vmatprep.subr.bf16.mxu0 0
      %631 = vmatpush1.bf16.xpose.msra.mxu0 0
      %632 = vmatprep.subr.bf16.mxu0 0
      %633 = vmatpush1.bf16.xpose.msra.mxu0 0
      %634 = vmatprep.subr.bf16.mxu0 0
      %635 = vmatpush1.bf16.xpose.msra.mxu0 0
      %636 = vmatprep.subr.bf16.mxu0 0
      %637 = vmatpush1.bf16.xpose.msra.mxu0 0
      %638 = vmatprep.subr.bf16.mxu0 0
      %639 = vmatpush1.bf16.xpose.msra.mxu0 0
      %640 = vmatprep.subr.bf16.mxu0 0
      %641 = vmatpush1.bf16.xpose.msra.mxu0 0
      %642 = vmatprep.subr.bf16.mxu0 0
      %643 = vmatpush1.bf16.xpose.msra.mxu0 0
      %644 = vmatprep.subr.bf16.mxu0 0
      %645 = vmatpush1.bf16.xpose.msra.mxu0 0
      %646 = vmatprep.subr.bf16.mxu0 0
      %647 = vmatpush1.bf16.xpose.msra.mxu0 0
      %648 = vmatprep.subr.bf16.mxu0 0
      %649 = vmatpush1.bf16.xpose.msra.mxu0 0
      %650 = vmatprep.subr.bf16.mxu0 0
      %651 = vmatpush1.bf16.xpose.msra.mxu0 0
      %652 = vmatprep.subr.bf16.mxu0 0
      %653 = vmatpush1.bf16.xpose.msra.mxu0 0
      %654 = vmatprep.subr.bf16.mxu0 0
      %655 = vmatpush1.bf16.xpose.msra.mxu0 0
      %656 = vmatprep.subr.bf16.mxu0 0
      %657 = vmatpush1.bf16.xpose.msra.mxu0 0
      %658 = vmatprep.mubr.bf16.mxu0 0
      %659 = vmatmul.mubr.bf16.gmra.mrb[0].mxu0 %v621
      %v660 = vpop.f32.mrb[0].mxu0
      %v661 = vadd.f32 0.0, %v660
      %v662 = vpop.f32.mrb[0].mxu0
      %v663 = vpop.f32.mrb[0].mxu0
      %v664 = vpop.f32.mrb[0].mxu0
      %665 = vdwg.mxu0
      %v666 = vsel %vm380, %v661, -1e+30
      %v667 = vsel %vm432, %v666, -inf
      %668 = vmax.xlane.f32.xlu0 %v667
      %v669 = vpop.xlane.xlu0 %668
      %v670 = vsub.f32 %v666, %v669
      %v671 = vmul.f32 %v670, 1.442695
      %v672 = vpow.pop %v671
      %v673 = vsel %vm432, %v672, 0.0
      %674 = vadd.xlane.f32.xlu0 %v673
      %v675 = vpop.xlane.xlu0 %674
      %v676 = vrcp.pop %v675
      %v677 = vmul.f32 %v672, %v676
      %v678 = vpack.c.bf16 %v677, %v677
      %679 = vrot.lane.b32.xlu0 %v375, 96
      %v680 = vpop.permute.xlu0 %679
      %v682 = vsel %vm432, %v678, 0
      %v685 = vsel %vm448, %v680, 0
      %687 = vmatprep.subr.bf16.mxu0 0
      %688 = vmatpush1.bf16.msra.mxu0 %v685
      %689 = vmatprep.subr.bf16.mxu0 0
      %690 = vmatpush1.bf16.msra.mxu0 0
      %691 = vmatprep.subr.bf16.mxu0 0
      %692 = vmatpush1.bf16.msra.mxu0 0
      %693 = vmatprep.subr.bf16.mxu0 0
      %694 = vmatpush1.bf16.msra.mxu0 0
      %695 = vmatprep.subr.bf16.mxu0 0
      %696 = vmatpush1.bf16.msra.mxu0 0
      %697 = vmatprep.subr.bf16.mxu0 0
      %698 = vmatpush1.bf16.msra.mxu0 0
      %699 = vmatprep.subr.bf16.mxu0 0
      %700 = vmatpush1.bf16.msra.mxu0 0
      %701 = vmatprep.subr.bf16.mxu0 0
      %702 = vmatpush1.bf16.msra.mxu0 0
      %703 = vmatprep.subr.bf16.mxu0 0
      %704 = vmatpush1.bf16.msra.mxu0 0
      %705 = vmatprep.subr.bf16.mxu0 0
      %706 = vmatpush1.bf16.msra.mxu0 0
      %707 = vmatprep.subr.bf16.mxu0 0
      %708 = vmatpush1.bf16.msra.mxu0 0
      %709 = vmatprep.subr.bf16.mxu0 0
      %710 = vmatpush1.bf16.msra.mxu0 0
      %711 = vmatprep.subr.bf16.mxu0 0
      %712 = vmatpush1.bf16.msra.mxu0 0
      %713 = vmatprep.subr.bf16.mxu0 0
      %714 = vmatpush1.bf16.msra.mxu0 0
      %715 = vmatprep.subr.bf16.mxu0 0
      %716 = vmatpush1.bf16.msra.mxu0 0
      %717 = vmatprep.subr.bf16.mxu0 0
      %718 = vmatpush1.bf16.msra.mxu0 0
      %719 = vmatprep.mubr.bf16.mxu0 0
      %720 = vmatmul.mubr.bf16.gmra.mrb[0].mxu0 %v682
      %v721 = vpop.f32.mrb[0].mxu0
      %v722 = vadd.f32 0.0, %v721
      %v723 = vpop.f32.mrb[0].mxu0
      %v724 = vpop.f32.mrb[0].mxu0
      %v725 = vpop.f32.mrb[0].mxu0
      %726 = vdwg.mxu0
      %v727 = vpack.c.bf16 %v722, %v722
      %v729 = vunpack.c.l.b16 %v727
      %v730 = vpack.c.b16 %v729, %v729
      %731 = vrot.lane.b32.xlu0 %v730, 32
      %v732 = vpop.permute.xlu0 %731
      %vm734 = vcmask 388352
      %735 = vst.msk [vmem:[#allocation2] sm:$0xf] %vm734, %v732
      %736 = vrot.lane.b32.xlu0 %v374, 80
      %v737 = vpop.permute.xlu0 %736
      %738 = vrot.lane.b32.xlu0 %v374, 16
      %v739 = vpop.permute.xlu0 %738
      %v741 = vsel %vm384, %v737, 0
      %v744 = vsel %vm384, %v739, 0
      %746 = vmatprep.subr.bf16.mxu0 0
      %747 = vmatpush1.bf16.xpose.msra.mxu0 %v744
      %748 = vmatprep.subr.bf16.mxu0 0
      %749 = vmatpush1.bf16.xpose.msra.mxu0 0
      %750 = vmatprep.subr.bf16.mxu0 0
      %751 = vmatpush1.bf16.xpose.msra.mxu0 0
      %752 = vmatprep.subr.bf16.mxu0 0
      %753 = vmatpush1.bf16.xpose.msra.mxu0 0
      %754 = vmatprep.subr.bf16.mxu0 0
      %755 = vmatpush1.bf16.xpose.msra.mxu0 0
      %756 = vmatprep.subr.bf16.mxu0 0
      %757 = vmatpush1.bf16.xpose.msra.mxu0 0
      %758 = vmatprep.subr.bf16.mxu0 0
      %759 = vmatpush1.bf16.xpose.msra.mxu0 0
      %760 = vmatprep.subr.bf16.mxu0 0
      %761 = vmatpush1.bf16.xpose.msra.mxu0 0
      %762 = vmatprep.subr.bf16.mxu0 0
      %763 = vmatpush1.bf16.xpose.msra.mxu0 0
      %764 = vmatprep.subr.bf16.mxu0 0
      %765 = vmatpush1.bf16.xpose.msra.mxu0 0
      %766 = vmatprep.subr.bf16.mxu0 0
      %767 = vmatpush1.bf16.xpose.msra.mxu0 0
      %768 = vmatprep.subr.bf16.mxu0 0
      %769 = vmatpush1.bf16.xpose.msra.mxu0 0
      %770 = vmatprep.subr.bf16.mxu0 0
      %771 = vmatpush1.bf16.xpose.msra.mxu0 0
      %772 = vmatprep.subr.bf16.mxu0 0
      %773 = vmatpush1.bf16.xpose.msra.mxu0 0
      %774 = vmatprep.subr.bf16.mxu0 0
      %775 = vmatpush1.bf16.xpose.msra.mxu0 0
      %776 = vmatprep.subr.bf16.mxu0 0
      %777 = vmatpush1.bf16.xpose.msra.mxu0 0
      %778 = vmatprep.mubr.bf16.mxu0 0
      %779 = vmatmul.mubr.bf16.gmra.mrb[0].mxu0 %v741
      %v780 = vpop.f32.mrb[0].mxu0
      %v781 = vadd.f32 0.0, %v780
      %v782 = vpop.f32.mrb[0].mxu0
      %v783 = vpop.f32.mrb[0].mxu0
      %v784 = vpop.f32.mrb[0].mxu0
      %785 = vdwg.mxu0
      %v786 = vsel %vm380, %v781, -1e+30
      %v787 = vsel %vm432, %v786, -inf
      %788 = vmax.xlane.f32.xlu0 %v787
      %v789 = vpop.xlane.xlu0 %788
      %v790 = vsub.f32 %v786, %v789
      %v791 = vmul.f32 %v790, 1.442695
      %v792 = vpow.pop %v791
      %v793 = vsel %vm432, %v792, 0.0
      %794 = vadd.xlane.f32.xlu0 %v793
      %v795 = vpop.xlane.xlu0 %794
      %v796 = vrcp.pop %v795
      %v797 = vmul.f32 %v792, %v796
      %v798 = vpack.c.bf16 %v797, %v797
      %799 = vrot.lane.b32.xlu0 %v375, 80
      %v800 = vpop.permute.xlu0 %799
      %v802 = vsel %vm432, %v798, 0
      %v805 = vsel %vm448, %v800, 0
      %807 = vmatprep.subr.bf16.mxu0 0
      %808 = vmatpush1.bf16.msra.mxu0 %v805
      %809 = vmatprep.subr.bf16.mxu0 0
      %810 = vmatpush1.bf16.msra.mxu0 0
      %811 = vmatprep.subr.bf16.mxu0 0
      %812 = vmatpush1.bf16.msra.mxu0 0
      %813 = vmatprep.subr.bf16.mxu0 0
      %814 = vmatpush1.bf16.msra.mxu0 0
      %815 = vmatprep.subr.bf16.mxu0 0
      %816 = vmatpush1.bf16.msra.mxu0 0
      %817 = vmatprep.subr.bf16.mxu0 0
      %818 = vmatpush1.bf16.msra.mxu0 0
      %819 = vmatprep.subr.bf16.mxu0 0
      %820 = vmatpush1.bf16.msra.mxu0 0
      %821 = vmatprep.subr.bf16.mxu0 0
      %822 = vmatpush1.bf16.msra.mxu0 0
      %823 = vmatprep.subr.bf16.mxu0 0
      %824 = vmatpush1.bf16.msra.mxu0 0
      %825 = vmatprep.subr.bf16.mxu0 0
      %826 = vmatpush1.bf16.msra.mxu0 0
      %827 = vmatprep.subr.bf16.mxu0 0
      %828 = vmatpush1.bf16.msra.mxu0 0
      %829 = vmatprep.subr.bf16.mxu0 0
      %830 = vmatpush1.bf16.msra.mxu0 0
      %831 = vmatprep.subr.bf16.mxu0 0
      %832 = vmatpush1.bf16.msra.mxu0 0
      %833 = vmatprep.subr.bf16.mxu0 0
      %834 = vmatpush1.bf16.msra.mxu0 0
      %835 = vmatprep.subr.bf16.mxu0 0
      %836 = vmatpush1.bf16.msra.mxu0 0
      %837 = vmatprep.subr.bf16.mxu0 0
      %838 = vmatpush1.bf16.msra.mxu0 0
      %839 = vmatprep.mubr.bf16.mxu0 0
      %840 = vmatmul.mubr.bf16.gmra.mrb[0].mxu0 %v802
      %v841 = vpop.f32.mrb[0].mxu0
      %v842 = vadd.f32 0.0, %v841
      %v843 = vpop.f32.mrb[0].mxu0
      %v844 = vpop.f32.mrb[0].mxu0
      %v845 = vpop.f32.mrb[0].mxu0
      %846 = vdwg.mxu0
      %v847 = vpack.c.bf16 %v842, %v842
      %v849 = vunpack.c.l.b16 %v847
      %v850 = vpack.c.b16 %v849, %v849
      %851 = vrot.lane.b32.xlu0 %v850, 48
      %v852 = vpop.permute.xlu0 %851
      %vm854 = vcmask 519552
      %855 = vst.msk [vmem:[#allocation2] sm:$0xf] %vm854, %v852
      %v856 = vld [vmem:[#allocation2] sm:$0xf]
      %v857 = vld [vmem:[%s4] sm:$0xf]
      %v858 = vld [vmem:[%s4 + $0x4] sm:$0xf]
      %v859 = vld [vmem:[%s4 + $0x8] sm:$0xf]
      %v860 = vld [vmem:[%s4 + $0xc] sm:$0xf]
      %v861 = vld [vmem:[%s4 + $0x10] sm:$0xf]
      %v862 = vld [vmem:[%s4 + $0x14] sm:$0xf]
      %v863 = vld [vmem:[%s4 + $0x18] sm:$0xf]
      %v864 = vld [vmem:[%s4 + $0x1c] sm:$0xf]
      %v865 = vld [vmem:[%s5] sm:$0x1]
      %v867 = vlaneseq
      %v868 = vshrl.u32 %v867, 7
      %v869 = vsub.s32 0, %v868
      %v870 = vrot.slane %v865, %v869
      %v880 = vunpack.c.l.b16 %v857
      %v881 = vunpack.c.l.b16 %v858
      %v882 = vunpack.c.l.b16 %v859
      %v883 = vunpack.c.l.b16 %v860
      %v884 = vunpack.c.l.b16 %v861
      %v885 = vunpack.c.l.b16 %v862
      %v886 = vunpack.c.l.b16 %v863
      %v887 = vunpack.c.l.b16 %v864
      %v888 = vpack.c.b16 %v881, %v880
      %v889 = vpack.c.b16 %v883, %v882
      %v890 = vpack.c.b16 %v885, %v884
      %v891 = vpack.c.b16 %v887, %v886
      %v897 = vsel %vm252, %v856, 0
      %899 = vmatprep.subr.bf16.mxu0 0
      %900 = vmatpush1.bf16.msra.mxu0 %v888
      %901 = vmatprep.subr.bf16.mxu0 0
      %902 = vmatpush1.bf16.msra.mxu0 %v889
      %903 = vmatprep.subr.bf16.mxu0 0
      %904 = vmatpush1.bf16.msra.mxu0 %v890
      %905 = vmatprep.subr.bf16.mxu0 0
      %906 = vmatpush1.bf16.msra.mxu0 %v891
      %907 = vmatprep.subr.bf16.mxu0 0
      %908 = vmatpush1.bf16.msra.mxu0 0
      %909 = vmatprep.subr.bf16.mxu0 0
      %910 = vmatpush1.bf16.msra.mxu0 0
      %911 = vmatprep.subr.bf16.mxu0 0
      %912 = vmatpush1.bf16.msra.mxu0 0
      %913 = vmatprep.subr.bf16.mxu0 0
      %914 = vmatpush1.bf16.msra.mxu0 0
      %915 = vmatprep.subr.bf16.mxu0 0
      %916 = vmatpush1.bf16.msra.mxu0 0
      %917 = vmatprep.subr.bf16.mxu0 0
      %918 = vmatpush1.bf16.msra.mxu0 0
      %919 = vmatprep.subr.bf16.mxu0 0
      %920 = vmatpush1.bf16.msra.mxu0 0
      %921 = vmatprep.subr.bf16.mxu0 0
      %922 = vmatpush1.bf16.msra.mxu0 0
      %923 = vmatprep.subr.bf16.mxu0 0
      %924 = vmatpush1.bf16.msra.mxu0 0
      %925 = vmatprep.subr.bf16.mxu0 0
      %926 = vmatpush1.bf16.msra.mxu0 0
      %927 = vmatprep.subr.bf16.mxu0 0
      %928 = vmatpush1.bf16.msra.mxu0 0
      %929 = vmatprep.subr.bf16.mxu0 0
      %930 = vmatpush1.bf16.msra.mxu0 0
      %931 = vmatprep.mubr.bf16.mxu0 0
      %932 = vmatmul.mubr.bf16.gmra.mrb[0].mxu0 %v897
      %v933 = vpop.f32.mrb[0].mxu0
      %v934 = vadd.f32 %v870, %v933
      %v935 = vpop.f32.mrb[0].mxu0
      %v936 = vpop.f32.mrb[0].mxu0
      %v937 = vpop.f32.mrb[0].mxu0
      %938 = vdwg.mxu0
      %v939 = vadd.f32 %v934, %v249
      %v940 = vpack.c.bf16 %v939, %v939
      %vm941 = vcmask 519168
      %942 = vst.msk [vmem:[%s246] sm:$0xf] %vm941, %v940
      %p943 = scmp.lt.s32.totalorder %s17, 1
      %s944 = scalar_select %p943, %s17, 1
      %s945 = smul.addr %s944, 4
      %s946 = scalar_lea.vmem %s6, %s945
      // Predicated region
      $region45: #{_lambda_.5} parent=43 // pred_check
        %p947 = pneg %p166
      $region46: #{_lambda_.5} parent=43 // pred_check_branch
        %949 = sbr.rel (%p947) target = $region48
      $region47: #{_lambda_.5} parent=43 // pred_region
        _
      $region48: #{_lambda_.5} parent=43 // pred_fallthru
        _
    $region44: #{_lambda_.5} parent=5 // pred_fallthru
      _
    %p950 = scmp.le.s32.totalorder 2, %s12
    // Predicated region
    $region49: #{_lambda_.5} parent=5 // pred_check
      %p951 = pneg %p950
    $region50: #{_lambda_.5} parent=5 // pred_check_branch
      %953 = sbr.rel (%p951) target = $region52
    $region51: #{_lambda_.5} parent=5 // pred_region
      %s954 = ssub.s32 %s12, 2
      // Predicated region
      $region53: #{_lambda_.5} parent=51 // pred_check
        %p955 = pneg %p172
      $region54: #{_lambda_.5} parent=51 // pred_check_branch
        %957 = sbr.rel (%p955) target = $region56
      $region55: #{_lambda_.5} parent=51 // pred_region
        %p958 = scmp.lt.s32.totalorder %s18, 1
        %s959 = scalar_select %p958, %s18, 1
        %s960 = smul.addr %s959, 4
        %s961 = scalar_lea.vmem %s6, %s960
      $region56: #{_lambda_.5} parent=51 // pred_fallthru
        _
    $region52: #{_lambda_.5} parent=5 // pred_fallthru
      _
  $region6: #{_lambda_.5} parent=0 // loop_footer
    %s16 = sadd.s32 1, %s12
  $region7: #{_lambda_.5} parent=0 // loop_footer_branch
    %11 = sbr.rel target = $region3
  $region8: #{_lambda_.5} parent=0 // loop_exit
    _

</llo_original>
